<compile_context>
chip_gen: v5e
topology: v5e:2x2
jax: 0.10.0
libtpu: 0.0.40
codegen_flags: <defaults>
</compile_context>

<pallas_src>
import math

import jax
import jax.numpy as jnp
from jax.experimental import pallas as pl
from jax.experimental.pallas import tpu as pltpu

# --- scaled-down synthetic config ---
VOCAB = 64
MAX_POS = 32
TYPE_VOCAB = 2
H = 128            # hidden size (stands in for 768) -> maps to the 128 lanes
NH = 2             # attention heads
DH = H // NH       # head dim
FFN = 4 * H        # 512
LAYERS = 2
K_OUT = 4          # classifier output dim `k`
B = 2
S = 8
ROWS = B * S       # 16 activation rows, VMEM-resident
EPS = 1e-12
LANE = 128         # lane width: classifier output padded to this


# ---------------- in-kernel helpers ----------------

def _layernorm(x, gamma, beta):
    """f32 LayerNorm over the last (lane) axis."""
    mu = jnp.mean(x, axis=-1, keepdims=True)
    var = jnp.mean(jnp.square(x - mu), axis=-1, keepdims=True)
    return (x - mu) * jax.lax.rsqrt(var + EPS) * gamma + beta


# ---------------- single fused kernel: embeddings-LN + encoder + head --------

def _roberta_kernel(emb_ref, mask_ref, misc_ref, pool_w_ref, dense_w_ref,
                    qkv_w_ref, ao_w_ref, f1_w_ref, f2_w_ref, vec_ref,
                    lin_ref, cat_ref, x_sc):
    layer = pl.program_id(0)

    @pl.when(layer == 0)
    def _():
        # Embedding LayerNorm (no residual) fused into the first grid step.
        emb = emb_ref[...].astype(jnp.float32)
        x_sc[...] = _layernorm(emb, misc_ref[2:3, :], misc_ref[3:4, :])

    x = x_sc[...]                                            # (ROWS, H) f32

    # ---- unpack the per-layer packed vector block (static, lane-aligned) ----
    vec = vec_ref[0]                                         # (8, FFN) f32
    f1_b = vec[0:1, :]                                       # (1, FFN)
    q_b = vec[1:2, 0:H]
    k_b = vec[1:2, H:2 * H]
    v_b = vec[1:2, 2 * H:3 * H]
    ao_b = vec[2:3, 0:H]
    f2_b = vec[2:3, H:2 * H]
    ln1_g = vec[2:3, 2 * H:3 * H]
    ln1_b = vec[2:3, 3 * H:4 * H]
    ln2_g = vec[3:4, 0:H]
    ln2_b = vec[3:4, H:2 * H]

    # ---- QKV projection (bf16 MXU, f32 accumulate) ----
    qkv = jnp.dot(x.astype(jnp.bfloat16), qkv_w_ref[0],
                  preferred_element_type=jnp.float32)        # (ROWS, 3H)
    q = qkv[:, 0:H] + q_b
    k = qkv[:, H:2 * H] + k_b
    v = qkv[:, 2 * H:3 * H] + v_b

    # ---- multi-head self-attention, batched over all B*S rows per head.
    #      The (ROWS, ROWS) additive mask already contains the padding bias
    #      and the block-diagonal cross-batch -1e9 blocks (f32 score path).
    scale = 1.0 / math.sqrt(DH)
    mask = mask_ref[...]                                     # (ROWS, ROWS) f32
    heads = []
    for h in range(NH):                                      # NH = 2, static
        c0, c1 = h * DH, (h + 1) * DH
        qs = q[:, c0:c1]                                     # (ROWS, DH)
        ks = k[:, c0:c1]
        vs = v[:, c0:c1]
        s = jax.lax.dot_general(
            qs, ks, dimension_numbers=(((1,), (1,)), ((), ())),
            preferred_element_type=jnp.float32) * scale + mask
        s = s - jnp.max(s, axis=-1, keepdims=True)
        p = jnp.exp(s)
        p = p * pl.reciprocal(jnp.sum(p, axis=-1, keepdims=True), approx=True)
        heads.append(jnp.dot(p, vs, preferred_element_type=jnp.float32))
    attn = jnp.concatenate(heads, axis=1)                    # (ROWS, H)

    # ---- attention output projection + residual + LN1 ----
    attn = jnp.dot(attn.astype(jnp.bfloat16), ao_w_ref[0],
                   preferred_element_type=jnp.float32) + ao_b
    x = _layernorm(attn + x, ln1_g, ln1_b)

    # ---- FFN (gelu) + residual + LN2 ----
    ff = jnp.dot(x.astype(jnp.bfloat16), f1_w_ref[0],
                 preferred_element_type=jnp.float32) + f1_b
    # TODO(synk): HF RoBERTa uses exact erf GELU; tanh approximation used here
    # (synthetic weights, and tanh is guaranteed to lower on the EUP).
    ff = jax.nn.gelu(ff)
    ff = jnp.dot(ff.astype(jnp.bfloat16), f2_w_ref[0],
                 preferred_element_type=jnp.float32) + f2_b
    x = _layernorm(ff + x, ln2_g, ln2_b)

    x_sc[...] = x                                            # carry to next layer

    # ---- fused head on the last grid step: pooler + seq-mean + concat + dense
    @pl.when(layer == LAYERS - 1)
    def _():
        x3 = x.reshape(B, S, H)          # (16,128)->(2,8,128): layout no-op
        cls_rows = x3[:, 0, :]                               # (B, H)
        mean_rows = jnp.mean(x3, axis=1)                     # (B, H)

        pooled = jnp.tanh(
            jnp.dot(cls_rows.astype(jnp.bfloat16), pool_w_ref[...],
                    preferred_element_type=jnp.float32) + misc_ref[0:1, :])
        cat = jnp.concatenate([pooled, mean_rows], axis=1)   # (B, 2H)
        cat_ref[...] = cat.astype(cat_ref.dtype)

        # nn.Dropout(p=0.2) is identity at inference time.
        # Classifier computed lane-dense (K padded to 128); sliced outside.
        lin = jnp.dot(cat.astype(jnp.bfloat16), dense_w_ref[...],
                      preferred_element_type=jnp.float32) + misc_ref[1:2, :]
        lin_ref[...] = lin.astype(lin_ref.dtype)


def pallas_roberta(emb, attn_mask, p):
    def const2(shape):
        return pl.BlockSpec(shape, lambda l: (0, 0))

    def per_layer(shape):
        return pl.BlockSpec(shape, lambda l: (l, 0, 0))

    return pl.pallas_call(
        _roberta_kernel,
        out_shape=(jax.ShapeDtypeStruct((B, LANE), jnp.float32),
                   jax.ShapeDtypeStruct((B, 2 * H), jnp.float32)),
        grid=(LAYERS,),
        in_specs=[
            const2((ROWS, H)),              # raw embeddings (fetched once)
            const2((ROWS, ROWS)),           # additive attention mask
            const2((8, LANE)),              # packed pool_b/dense_b/emb-LN
            const2((H, H)),                 # pooler weight (bf16)
            const2((2 * H, LANE)),          # classifier weight, lane-padded
            per_layer((1, H, 3 * H)),       # qkv_w   (bf16)
            per_layer((1, H, H)),           # attn out w (bf16)
            per_layer((1, H, FFN)),         # ffn1 w  (bf16)
            per_layer((1, FFN, H)),         # ffn2 w  (bf16)
            per_layer((1, 8, FFN)),         # packed per-layer biases/LN params
        ],
        out_specs=(pl.BlockSpec((B, LANE), lambda l: (0, 0)),
                   pl.BlockSpec((B, 2 * H), lambda l: (0, 0))),
        scratch_shapes=[pltpu.VMEM((ROWS, H), jnp.float32)],  # resident acts
        compiler_params=pltpu.CompilerParams(
            dimension_semantics=("arbitrary",)),   # layers run sequentially
    )(emb, attn_mask, p["misc"], p["pool_w"], p["dense_w_pad"],
      p["qkv_w"], p["ao_w"], p["ffn1_w"], p["ffn2_w"], p["layer_vec"])


# ---------------- parameters (deterministic synthetic init) ----------------

def init_params(key):
    ks = jax.random.split(key, 16)

    def normal(k, shape, scale=0.02):
        return jax.random.normal(k, shape, jnp.float32) * scale

    # per-layer small vectors, packed into one (LAYERS, 8, FFN) f32 block
    qkv_b = normal(ks[9], (LAYERS, 3 * H))
    ao_b = normal(ks[10], (LAYERS, H))
    f1_b = normal(ks[11], (LAYERS, FFN))
    f2_b = normal(ks[12], (LAYERS, H))
    ln1_g = jnp.ones((LAYERS, H), jnp.float32)
    ln1_b = jnp.zeros((LAYERS, H), jnp.float32)
    ln2_g = jnp.ones((LAYERS, H), jnp.float32)
    ln2_b = jnp.zeros((LAYERS, H), jnp.float32)

    layer_vec = jnp.zeros((LAYERS, 8, FFN), jnp.float32)
    layer_vec = layer_vec.at[:, 0, :].set(f1_b)
    layer_vec = layer_vec.at[:, 1, 0:3 * H].set(qkv_b)
    layer_vec = layer_vec.at[:, 2, 0:H].set(ao_b)
    layer_vec = layer_vec.at[:, 2, H:2 * H].set(f2_b)
    layer_vec = layer_vec.at[:, 2, 2 * H:3 * H].set(ln1_g)
    layer_vec = layer_vec.at[:, 2, 3 * H:4 * H].set(ln1_b)
    layer_vec = layer_vec.at[:, 3, 0:H].set(ln2_g)
    layer_vec = layer_vec.at[:, 3, H:2 * H].set(ln2_b)

    # misc (8, 128): row0 pool_b, row1 dense_b (lane-padded), row2/3 emb LN g/b
    pool_b = normal(ks[13], (H,))
    dense_b = normal(ks[14], (K_OUT,))
    misc = jnp.zeros((8, LANE), jnp.float32)
    misc = misc.at[0, :].set(pool_b)
    misc = misc.at[1, :K_OUT].set(dense_b)
    misc = misc.at[2, :].set(jnp.ones((H,), jnp.float32))   # emb LN gamma
    # row 3 stays zero (emb LN beta)

    dense_w = normal(ks[8], (2 * H, K_OUT))                 # nn.Linear(2*768, k)

    params = {
        "word_emb": normal(ks[0], (VOCAB, H)),
        "pos_emb": normal(ks[1], (MAX_POS, H)),
        "type_emb": normal(ks[2], (TYPE_VOCAB, H)),
        # encoder matmul operands stored in bf16 (MXU full-rate)
        "qkv_w": normal(ks[3], (LAYERS, H, 3 * H)).astype(jnp.bfloat16),
        "ao_w": normal(ks[4], (LAYERS, H, H)).astype(jnp.bfloat16),
        "ffn1_w": normal(ks[5], (LAYERS, H, FFN)).astype(jnp.bfloat16),
        "ffn2_w": normal(ks[6], (LAYERS, FFN, H)).astype(jnp.bfloat16),
        "layer_vec": layer_vec,
        # head
        "pool_w": normal(ks[7], (H, H)).astype(jnp.bfloat16),
        "dense_w_pad": jnp.pad(dense_w, ((0, 0), (0, LANE - K_OUT))
                               ).astype(jnp.bfloat16),
        "misc": misc,
    }
    return params


# ---------------- forward pass ----------------

def roberta_forward(params, input_ids, attention_mask, token_type_ids):
    Bn, Sn = input_ids.shape
    # Embedding gathers are XLA glue; all dense math runs inside ONE Pallas call.
    # TODO(synk): HF RoBERTa derives position ids from the attention mask
    # starting at padding_idx+1; positions 0..S-1 are used here (synthetic).
    emb = (jnp.take(params["word_emb"], input_ids, axis=0)
           + params["pos_emb"][None, :Sn, :]
           + jnp.take(params["type_emb"], token_type_ids, axis=0))
    emb = emb.reshape(Bn * Sn, H)

    # Additive attention mask for the batch-merged (B*S, B*S) score matrix:
    # padding bias on key columns + block-diagonal -1e9 for cross-batch pairs.
    key_bias = (1.0 - attention_mask.astype(jnp.float32)) * -1e9   # (B, S)
    key_bias_flat = key_bias.reshape(Bn * Sn)
    batch_idx = jnp.arange(Bn * Sn) // Sn
    same_batch = batch_idx[:, None] == batch_idx[None, :]
    attn_mask = jnp.where(same_batch, key_bias_flat[None, :],
                          jnp.float32(-1e9))                       # (B*S, B*S)

    lin_pad, output = pallas_roberta(emb, attn_mask, params)
    linear_output = lin_pad[:, :K_OUT]
    return linear_output, output


if __name__ == "__main__":
    key = jax.random.PRNGKey(0)
    pk, ik = jax.random.split(key)
    params = init_params(pk)

    input_ids = jax.random.randint(ik, (B, S), 0, VOCAB)
    attention_mask = jnp.ones((B, S), jnp.int32).at[:, S - 2:].set(0)  # 2 pads
    token_type_ids = jnp.zeros((B, S), jnp.int32)

    fwd = jax.jit(roberta_forward)
    linear_output, output = fwd(params, input_ids, attention_mask,
                                token_type_ids)
    jax.block_until_ready((linear_output, output))

    assert linear_output.shape == (B, K_OUT)
    assert output.shape == (B, 2 * H)
    assert bool(jnp.all(jnp.isfinite(linear_output)))
    assert bool(jnp.all(jnp.isfinite(output)))
    print("KERNEL_OK")
</pallas_src>

<mosaic_0001>
module attributes {stable_mosaic.version = 11 : i64} {
  func.func @_roberta_kernel(%arg0: i32, %arg1: memref<16x128xf32, #tpu.memory_space<vmem>>, %arg2: memref<16x16xf32, #tpu.memory_space<vmem>>, %arg3: memref<8x128xf32, #tpu.memory_space<vmem>>, %arg4: memref<128x128xbf16, #tpu.memory_space<vmem>>, %arg5: memref<256x128xbf16, #tpu.memory_space<vmem>>, %arg6: memref<1x128x384xbf16, #tpu.memory_space<vmem>>, %arg7: memref<1x128x128xbf16, #tpu.memory_space<vmem>>, %arg8: memref<1x128x512xbf16, #tpu.memory_space<vmem>>, %arg9: memref<1x512x128xbf16, #tpu.memory_space<vmem>>, %arg10: memref<1x8x512xf32, #tpu.memory_space<vmem>>, %arg11: memref<2x128xf32, #tpu.memory_space<vmem>>, %arg12: memref<2x256xf32, #tpu.memory_space<vmem>>, %arg13: memref<16x128xf32, #tpu.memory_space<vmem>>) attributes {dimension_semantics = [#tpu.dimension_semantics<arbitrary>], iteration_bounds = array<i64: 2>, scalar_prefetch = 0 : i64, scratch_operands = 1 : i64, tpu.core_type = #tpu.core_type<tc>, window_params = [{pipeline_mode = #tpu.pipeline_mode<synchronous>, transform_indices = @transform_0, window_bounds = array<i64: 16, 128>}, {pipeline_mode = #tpu.pipeline_mode<synchronous>, transform_indices = @transform_1, window_bounds = array<i64: 16, 16>}, {pipeline_mode = #tpu.pipeline_mode<synchronous>, transform_indices = @transform_2, window_bounds = array<i64: 8, 128>}, {pipeline_mode = #tpu.pipeline_mode<synchronous>, transform_indices = @transform_3, window_bounds = array<i64: 128, 128>}, {pipeline_mode = #tpu.pipeline_mode<synchronous>, transform_indices = @transform_4, window_bounds = array<i64: 256, 128>}, {transform_indices = @transform_5, window_bounds = array<i64: 1, 128, 384>}, {transform_indices = @transform_6, window_bounds = array<i64: 1, 128, 128>}, {transform_indices = @transform_7, window_bounds = array<i64: 1, 128, 512>}, {transform_indices = @transform_8, window_bounds = array<i64: 1, 512, 128>}, {transform_indices = @transform_9, window_bounds = array<i64: 1, 8, 512>}, {pipeline_mode = #tpu.pipeline_mode<synchronous>, transform_indices = @transform_10, window_bounds = array<i64: 2, 128>}, {pipeline_mode = #tpu.pipeline_mode<synchronous>, transform_indices = @transform_11, window_bounds = array<i64: 2, 256>}]} {
    %c0_i32 = arith.constant 0 : i32
    %0 = arith.cmpi eq, %arg0, %c0_i32 : i32
    %1 = arith.extui %0 : i1 to i32
    %c0_i32_0 = arith.constant 0 : i32
    %2 = arith.cmpi ne, %1, %c0_i32_0 : i32
    scf.if %2 {
      %c0_49 = arith.constant 0 : index
      %c0_50 = arith.constant 0 : index
      %148 = vector.load %arg1[%c0_49, %c0_50] : memref<16x128xf32, #tpu.memory_space<vmem>>, vector<16x128xf32>
      %c2 = arith.constant 2 : index
      %c0_51 = arith.constant 0 : index
      %149 = vector.load %arg3[%c2, %c0_51] : memref<8x128xf32, #tpu.memory_space<vmem>>, vector<1x128xf32>
      %c3 = arith.constant 3 : index
      %c0_52 = arith.constant 0 : index
      %150 = vector.load %arg3[%c3, %c0_52] : memref<8x128xf32, #tpu.memory_space<vmem>>, vector<1x128xf32>
      %cst_53 = arith.constant dense<0.000000e+00> : vector<16xf32>
      %151 = vector.multi_reduction <add>, %148, %cst_53 [1] : vector<16x128xf32> to vector<16xf32>
      %152 = vector.shape_cast %151 : vector<16xf32> to vector<16x1xf32>
      %cst_54 = arith.constant 1.280000e+02 : f32
      %153 = vector.broadcast %cst_54 : f32 to vector<16x1xf32>
      %154 = arith.divf %152, %153 : vector<16x1xf32>
      %155 = vector.broadcast %154 : vector<16x1xf32> to vector<16x128xf32>
      %156 = arith.subf %148, %155 : vector<16x128xf32>
      %157 = arith.mulf %156, %156 : vector<16x128xf32>
      %cst_55 = arith.constant dense<0.000000e+00> : vector<16xf32>
      %158 = vector.multi_reduction <add>, %157, %cst_55 [1] : vector<16x128xf32> to vector<16xf32>
      %159 = vector.shape_cast %158 : vector<16xf32> to vector<16x1xf32>
      %cst_56 = arith.constant 1.280000e+02 : f32
      %160 = vector.broadcast %cst_56 : f32 to vector<16x1xf32>
      %161 = arith.divf %159, %160 : vector<16x1xf32>
      %162 = vector.broadcast %154 : vector<16x1xf32> to vector<16x128xf32>
      %163 = arith.subf %148, %162 : vector<16x128xf32>
      %cst_57 = arith.constant 9.99999996E-13 : f32
      %164 = vector.broadcast %cst_57 : f32 to vector<16x1xf32>
      %165 = arith.addf %161, %164 : vector<16x1xf32>
      %166 = math.rsqrt %165 : vector<16x1xf32>
      %167 = vector.broadcast %166 : vector<16x1xf32> to vector<16x128xf32>
      %168 = arith.mulf %163, %167 : vector<16x128xf32>
      %169 = vector.broadcast %149 : vector<1x128xf32> to vector<16x128xf32>
      %170 = arith.mulf %168, %169 : vector<16x128xf32>
      %171 = vector.broadcast %150 : vector<1x128xf32> to vector<16x128xf32>
      %172 = arith.addf %170, %171 : vector<16x128xf32>
      %c0_58 = arith.constant 0 : index
      %c0_59 = arith.constant 0 : index
      %173 = vector.load %arg13[%c0_58, %c0_59] : memref<16x128xf32, #tpu.memory_space<vmem>>, vector<16x128xf32>
      tpu.vector_store %arg13[%c0_58, %c0_59], %172 {strides = array<i32>} : memref<16x128xf32, #tpu.memory_space<vmem>>, vector<16x128xf32>,
    } else {
    }
    %c0 = arith.constant 0 : index
    %c0_1 = arith.constant 0 : index
    %3 = vector.load %arg13[%c0, %c0_1] : memref<16x128xf32, #tpu.memory_space<vmem>>, vector<16x128xf32>
    %c0_2 = arith.constant 0 : index
    %c0_3 = arith.constant 0 : index
    %c0_4 = arith.constant 0 : index
    %4 = vector.load %arg10[%c0_2, %c0_3, %c0_4] : memref<1x8x512xf32, #tpu.memory_space<vmem>>, vector<1x8x512xf32>
    %5 = vector.shape_cast %4 : vector<1x8x512xf32> to vector<8x512xf32>
    %6 = vector.extract_strided_slice %5 {offsets = [0, 0], sizes = [1, 512], strides = [1, 1]} : vector<8x512xf32> to vector<1x512xf32>
    %7 = vector.extract_strided_slice %5 {offsets = [1, 0], sizes = [1, 128], strides = [1, 1]} : vector<8x512xf32> to vector<1x128xf32>
    %8 = vector.extract_strided_slice %5 {offsets = [1, 128], sizes = [1, 128], strides = [1, 1]} : vector<8x512xf32> to vector<1x128xf32>
    %9 = vector.extract_strided_slice %5 {offsets = [1, 256], sizes = [1, 128], strides = [1, 1]} : vector<8x512xf32> to vector<1x128xf32>
    %10 = vector.extract_strided_slice %5 {offsets = [2, 0], sizes = [1, 128], strides = [1, 1]} : vector<8x512xf32> to vector<1x128xf32>
    %11 = vector.extract_strided_slice %5 {offsets = [2, 128], sizes = [1, 128], strides = [1, 1]} : vector<8x512xf32> to vector<1x128xf32>
    %12 = vector.extract_strided_slice %5 {offsets = [2, 256], sizes = [1, 128], strides = [1, 1]} : vector<8x512xf32> to vector<1x128xf32>
    %13 = vector.extract_strided_slice %5 {offsets = [2, 384], sizes = [1, 128], strides = [1, 1]} : vector<8x512xf32> to vector<1x128xf32>
    %14 = vector.extract_strided_slice %5 {offsets = [3, 0], sizes = [1, 128], strides = [1, 1]} : vector<8x512xf32> to vector<1x128xf32>
    %15 = vector.extract_strided_slice %5 {offsets = [3, 128], sizes = [1, 128], strides = [1, 1]} : vector<8x512xf32> to vector<1x128xf32>
    %16 = arith.truncf %3 : vector<16x128xf32> to vector<16x128xbf16>
    %c0_5 = arith.constant 0 : index
    %c0_6 = arith.constant 0 : index
    %c0_7 = arith.constant 0 : index
    %17 = vector.load %arg6[%c0_5, %c0_6, %c0_7] : memref<1x128x384xbf16, #tpu.memory_space<vmem>>, vector<1x128x384xbf16>
    %18 = vector.shape_cast %17 : vector<1x128x384xbf16> to vector<128x384xbf16>
    %cst = arith.constant dense<0.000000e+00> : vector<16x384xf32>
    %19 = tpu.matmul %16, %18, %cst {dimension_numbers = #tpu.dot_dimension_numbers<[1], [0], [0], [1], [0, 0, 1, 1], [], []>} : vector<16x128xbf16>, vector<128x384xbf16>, vector<16x384xf32> -> vector<16x384xf32>
    %20 = vector.extract_strided_slice %19 {offsets = [0, 0], sizes = [16, 128], strides = [1, 1]} : vector<16x384xf32> to vector<16x128xf32>
    %21 = vector.broadcast %7 : vector<1x128xf32> to vector<16x128xf32>
    %22 = arith.addf %20, %21 : vector<16x128xf32>
    %23 = vector.extract_strided_slice %19 {offsets = [0, 128], sizes = [16, 128], strides = [1, 1]} : vector<16x384xf32> to vector<16x128xf32>
    %24 = vector.broadcast %8 : vector<1x128xf32> to vector<16x128xf32>
    %25 = arith.addf %23, %24 : vector<16x128xf32>
    %26 = vector.extract_strided_slice %19 {offsets = [0, 256], sizes = [16, 128], strides = [1, 1]} : vector<16x384xf32> to vector<16x128xf32>
    %27 = vector.broadcast %9 : vector<1x128xf32> to vector<16x128xf32>
    %28 = arith.addf %26, %27 : vector<16x128xf32>
    %c0_8 = arith.constant 0 : index
    %c0_9 = arith.constant 0 : index
    %29 = vector.load %arg2[%c0_8, %c0_9] : memref<16x16xf32, #tpu.memory_space<vmem>>, vector<16x16xf32>
    %30 = vector.extract_strided_slice %22 {offsets = [0, 0], sizes = [16, 64], strides = [1, 1]} : vector<16x128xf32> to vector<16x64xf32>
    %31 = vector.extract_strided_slice %25 {offsets = [0, 0], sizes = [16, 64], strides = [1, 1]} : vector<16x128xf32> to vector<16x64xf32>
    %32 = vector.extract_strided_slice %28 {offsets = [0, 0], sizes = [16, 64], strides = [1, 1]} : vector<16x128xf32> to vector<16x64xf32>
    %cst_10 = arith.constant dense<0.000000e+00> : vector<16x16xf32>
    %33 = tpu.matmul %30, %31, %cst_10 {dimension_numbers = #tpu.dot_dimension_numbers<[1], [1], [0], [0], [0, 0, 1, 0], [], []>} : vector<16x64xf32>, vector<16x64xf32>, vector<16x16xf32> -> vector<16x16xf32>
    %cst_11 = arith.constant 1.250000e-01 : f32
    %34 = vector.broadcast %cst_11 : f32 to vector<16x16xf32>
    %35 = arith.mulf %33, %34 : vector<16x16xf32>
    %36 = arith.addf %35, %29 : vector<16x16xf32>
    %cst_12 = arith.constant dense<0xFF800000> : vector<16xf32>
    %37 = vector.multi_reduction <maximumf>, %36, %cst_12 [1] : vector<16x16xf32> to vector<16xf32>
    %38 = vector.shape_cast %37 : vector<16xf32> to vector<16x1xf32>
    %39 = vector.broadcast %38 : vector<16x1xf32> to vector<16x16xf32>
    %40 = arith.subf %36, %39 : vector<16x16xf32>
    %41 = math.exp %40 : vector<16x16xf32>
    %cst_13 = arith.constant dense<0.000000e+00> : vector<16xf32>
    %42 = vector.multi_reduction <add>, %41, %cst_13 [1] : vector<16x16xf32> to vector<16xf32>
    %43 = vector.shape_cast %42 : vector<16xf32> to vector<16x1xf32>
    %44 = tpu.reciprocal %43 {approx = true} : vector<16x1xf32> -> vector<16x1xf32>
    %45 = vector.broadcast %44 : vector<16x1xf32> to vector<16x16xf32>
    %46 = arith.mulf %41, %45 : vector<16x16xf32>
    %cst_14 = arith.constant dense<0.000000e+00> : vector<16x64xf32>
    %47 = tpu.matmul %46, %32, %cst_14 {dimension_numbers = #tpu.dot_dimension_numbers<[1], [0], [0], [1], [0, 0, 1, 1], [], []>} : vector<16x16xf32>, vector<16x64xf32>, vector<16x64xf32> -> vector<16x64xf32>
    %48 = vector.extract_strided_slice %22 {offsets = [0, 64], sizes = [16, 64], strides = [1, 1]} : vector<16x128xf32> to vector<16x64xf32>
    %49 = vector.extract_strided_slice %25 {offsets = [0, 64], sizes = [16, 64], strides = [1, 1]} : vector<16x128xf32> to vector<16x64xf32>
    %50 = vector.extract_strided_slice %28 {offsets = [0, 64], sizes = [16, 64], strides = [1, 1]} : vector<16x128xf32> to vector<16x64xf32>
    %cst_15 = arith.constant dense<0.000000e+00> : vector<16x16xf32>
    %51 = tpu.matmul %48, %49, %cst_15 {dimension_numbers = #tpu.dot_dimension_numbers<[1], [1], [0], [0], [0, 0, 1, 0], [], []>} : vector<16x64xf32>, vector<16x64xf32>, vector<16x16xf32> -> vector<16x16xf32>
    %cst_16 = arith.constant 1.250000e-01 : f32
    %52 = vector.broadcast %cst_16 : f32 to vector<16x16xf32>
    %53 = arith.mulf %51, %52 : vector<16x16xf32>
    %54 = arith.addf %53, %29 : vector<16x16xf32>
    %cst_17 = arith.constant dense<0xFF800000> : vector<16xf32>
    %55 = vector.multi_reduction <maximumf>, %54, %cst_17 [1] : vector<16x16xf32> to vector<16xf32>
    %56 = vector.shape_cast %55 : vector<16xf32> to vector<16x1xf32>
    %57 = vector.broadcast %56 : vector<16x1xf32> to vector<16x16xf32>
    %58 = arith.subf %54, %57 : vector<16x16xf32>
    %59 = math.exp %58 : vector<16x16xf32>
    %cst_18 = arith.constant dense<0.000000e+00> : vector<16xf32>
    %60 = vector.multi_reduction <add>, %59, %cst_18 [1] : vector<16x16xf32> to vector<16xf32>
    %61 = vector.shape_cast %60 : vector<16xf32> to vector<16x1xf32>
    %62 = tpu.reciprocal %61 {approx = true} : vector<16x1xf32> -> vector<16x1xf32>
    %63 = vector.broadcast %62 : vector<16x1xf32> to vector<16x16xf32>
    %64 = arith.mulf %59, %63 : vector<16x16xf32>
    %cst_19 = arith.constant dense<0.000000e+00> : vector<16x64xf32>
    %65 = tpu.matmul %64, %50, %cst_19 {dimension_numbers = #tpu.dot_dimension_numbers<[1], [0], [0], [1], [0, 0, 1, 1], [], []>} : vector<16x16xf32>, vector<16x64xf32>, vector<16x64xf32> -> vector<16x64xf32>
    %66 = tpu.concatenate %47, %65 in 1 : vector<16x64xf32>, vector<16x64xf32> -> vector<16x128xf32>
    %67 = arith.truncf %66 : vector<16x128xf32> to vector<16x128xbf16>
    %c0_20 = arith.constant 0 : index
    %c0_21 = arith.constant 0 : index
    %c0_22 = arith.constant 0 : index
    %68 = vector.load %arg7[%c0_20, %c0_21, %c0_22] : memref<1x128x128xbf16, #tpu.memory_space<vmem>>, vector<1x128x128xbf16>
    %69 = vector.shape_cast %68 : vector<1x128x128xbf16> to vector<128x128xbf16>
    %cst_23 = arith.constant dense<0.000000e+00> : vector<16x128xf32>
    %70 = tpu.matmul %67, %69, %cst_23 {dimension_numbers = #tpu.dot_dimension_numbers<[1], [0], [0], [1], [0, 0, 1, 1], [], []>} : vector<16x128xbf16>, vector<128x128xbf16>, vector<16x128xf32> -> vector<16x128xf32>
    %71 = vector.broadcast %10 : vector<1x128xf32> to vector<16x128xf32>
    %72 = arith.addf %70, %71 : vector<16x128xf32>
    %73 = arith.addf %72, %3 : vector<16x128xf32>
    %cst_24 = arith.constant dense<0.000000e+00> : vector<16xf32>
    %74 = vector.multi_reduction <add>, %73, %cst_24 [1] : vector<16x128xf32> to vector<16xf32>
    %75 = vector.shape_cast %74 : vector<16xf32> to vector<16x1xf32>
    %cst_25 = arith.constant 1.280000e+02 : f32
    %76 = vector.broadcast %cst_25 : f32 to vector<16x1xf32>
    %77 = arith.divf %75, %76 : vector<16x1xf32>
    %78 = vector.broadcast %77 : vector<16x1xf32> to vector<16x128xf32>
    %79 = arith.subf %73, %78 : vector<16x128xf32>
    %80 = arith.mulf %79, %79 : vector<16x128xf32>
    %cst_26 = arith.constant dense<0.000000e+00> : vector<16xf32>
    %81 = vector.multi_reduction <add>, %80, %cst_26 [1] : vector<16x128xf32> to vector<16xf32>
    %82 = vector.shape_cast %81 : vector<16xf32> to vector<16x1xf32>
    %cst_27 = arith.constant 1.280000e+02 : f32
    %83 = vector.broadcast %cst_27 : f32 to vector<16x1xf32>
    %84 = arith.divf %82, %83 : vector<16x1xf32>
    %85 = vector.broadcast %77 : vector<16x1xf32> to vector<16x128xf32>
    %86 = arith.subf %73, %85 : vector<16x128xf32>
    %cst_28 = arith.constant 9.99999996E-13 : f32
    %87 = vector.broadcast %cst_28 : f32 to vector<16x1xf32>
    %88 = arith.addf %84, %87 : vector<16x1xf32>
    %89 = math.rsqrt %88 : vector<16x1xf32>
    %90 = vector.broadcast %89 : vector<16x1xf32> to vector<16x128xf32>
    %91 = arith.mulf %86, %90 : vector<16x128xf32>
    %92 = vector.broadcast %12 : vector<1x128xf32> to vector<16x128xf32>
    %93 = arith.mulf %91, %92 : vector<16x128xf32>
    %94 = vector.broadcast %13 : vector<1x128xf32> to vector<16x128xf32>
    %95 = arith.addf %93, %94 : vector<16x128xf32>
    %96 = arith.truncf %95 : vector<16x128xf32> to vector<16x128xbf16>
    %c0_29 = arith.constant 0 : index
    %c0_30 = arith.constant 0 : index
    %c0_31 = arith.constant 0 : index
    %97 = vector.load %arg8[%c0_29, %c0_30, %c0_31] : memref<1x128x512xbf16, #tpu.memory_space<vmem>>, vector<1x128x512xbf16>
    %98 = vector.shape_cast %97 : vector<1x128x512xbf16> to vector<128x512xbf16>
    %cst_32 = arith.constant dense<0.000000e+00> : vector<16x512xf32>
    %99 = tpu.matmul %96, %98, %cst_32 {dimension_numbers = #tpu.dot_dimension_numbers<[1], [0], [0], [1], [0, 0, 1, 1], [], []>} : vector<16x128xbf16>, vector<128x512xbf16>, vector<16x512xf32> -> vector<16x512xf32>
    %100 = vector.broadcast %6 : vector<1x512xf32> to vector<16x512xf32>
    %101 = arith.addf %99, %100 : vector<16x512xf32>
    %102 = arith.mulf %101, %101 : vector<16x512xf32>
    %103 = arith.mulf %101, %102 : vector<16x512xf32>
    %cst_33 = arith.constant 4.471500e-02 : f32
    %104 = vector.broadcast %cst_33 : f32 to vector<16x512xf32>
    %105 = arith.mulf %104, %103 : vector<16x512xf32>
    %106 = arith.addf %101, %105 : vector<16x512xf32>
    %cst_34 = arith.constant 0.797884583 : f32
    %107 = vector.broadcast %cst_34 : f32 to vector<16x512xf32>
    %108 = arith.mulf %107, %106 : vector<16x512xf32>
    %109 = math.tanh %108 : vector<16x512xf32>
    %cst_35 = arith.constant 1.000000e+00 : f32
    %110 = vector.broadcast %cst_35 : f32 to vector<16x512xf32>
    %111 = arith.addf %110, %109 : vector<16x512xf32>
    %cst_36 = arith.constant 5.000000e-01 : f32
    %112 = vector.broadcast %cst_36 : f32 to vector<16x512xf32>
    %113 = arith.mulf %112, %111 : vector<16x512xf32>
    %114 = arith.mulf %101, %113 : vector<16x512xf32>
    %115 = arith.truncf %114 : vector<16x512xf32> to vector<16x512xbf16>
    %c0_37 = arith.constant 0 : index
    %c0_38 = arith.constant 0 : index
    %c0_39 = arith.constant 0 : index
    %116 = vector.load %arg9[%c0_37, %c0_38, %c0_39] : memref<1x512x128xbf16, #tpu.memory_space<vmem>>, vector<1x512x128xbf16>
    %117 = vector.shape_cast %116 : vector<1x512x128xbf16> to vector<512x128xbf16>
    %cst_40 = arith.constant dense<0.000000e+00> : vector<16x128xf32>
    %118 = tpu.matmul %115, %117, %cst_40 {dimension_numbers = #tpu.dot_dimension_numbers<[1], [0], [0], [1], [0, 0, 1, 1], [], []>} : vector<16x512xbf16>, vector<512x128xbf16>, vector<16x128xf32> -> vector<16x128xf32>
    %119 = vector.broadcast %11 : vector<1x128xf32> to vector<16x128xf32>
    %120 = arith.addf %118, %119 : vector<16x128xf32>
    %121 = arith.addf %120, %95 : vector<16x128xf32>
    %cst_41 = arith.constant dense<0.000000e+00> : vector<16xf32>
    %122 = vector.multi_reduction <add>, %121, %cst_41 [1] : vector<16x128xf32> to vector<16xf32>
    %123 = vector.shape_cast %122 : vector<16xf32> to vector<16x1xf32>
    %cst_42 = arith.constant 1.280000e+02 : f32
    %124 = vector.broadcast %cst_42 : f32 to vector<16x1xf32>
    %125 = arith.divf %123, %124 : vector<16x1xf32>
    %126 = vector.broadcast %125 : vector<16x1xf32> to vector<16x128xf32>
    %127 = arith.subf %121, %126 : vector<16x128xf32>
    %128 = arith.mulf %127, %127 : vector<16x128xf32>
    %cst_43 = arith.constant dense<0.000000e+00> : vector<16xf32>
    %129 = vector.multi_reduction <add>, %128, %cst_43 [1] : vector<16x128xf32> to vector<16xf32>
    %130 = vector.shape_cast %129 : vector<16xf32> to vector<16x1xf32>
    %cst_44 = arith.constant 1.280000e+02 : f32
    %131 = vector.broadcast %cst_44 : f32 to vector<16x1xf32>
    %132 = arith.divf %130, %131 : vector<16x1xf32>
    %133 = vector.broadcast %125 : vector<16x1xf32> to vector<16x128xf32>
    %134 = arith.subf %121, %133 : vector<16x128xf32>
    %cst_45 = arith.constant 9.99999996E-13 : f32
    %135 = vector.broadcast %cst_45 : f32 to vector<16x1xf32>
    %136 = arith.addf %132, %135 : vector<16x1xf32>
    %137 = math.rsqrt %136 : vector<16x1xf32>
    %138 = vector.broadcast %137 : vector<16x1xf32> to vector<16x128xf32>
    %139 = arith.mulf %134, %138 : vector<16x128xf32>
    %140 = vector.broadcast %14 : vector<1x128xf32> to vector<16x128xf32>
    %141 = arith.mulf %139, %140 : vector<16x128xf32>
    %142 = vector.broadcast %15 : vector<1x128xf32> to vector<16x128xf32>
    %143 = arith.addf %141, %142 : vector<16x128xf32>
    %c0_46 = arith.constant 0 : index
    %c0_47 = arith.constant 0 : index
    %144 = vector.load %arg13[%c0_46, %c0_47] : memref<16x128xf32, #tpu.memory_space<vmem>>, vector<16x128xf32>
    tpu.vector_store %arg13[%c0_46, %c0_47], %143 {strides = array<i32>} : memref<16x128xf32, #tpu.memory_space<vmem>>, vector<16x128xf32>,
    %c1_i32 = arith.constant 1 : i32
    %145 = arith.cmpi eq, %arg0, %c1_i32 : i32
    %146 = arith.extui %145 : i1 to i32
    %c0_i32_48 = arith.constant 0 : i32
    %147 = arith.cmpi ne, %146, %c0_i32_48 : i32
    scf.if %147 {
      %148 = vector.shape_cast %143 : vector<16x128xf32> to vector<2x8x128xf32>
      %149 = vector.extract_strided_slice %148 {offsets = [0, 0, 0], sizes = [2, 1, 128], strides = [1, 1, 1]} : vector<2x8x128xf32> to vector<2x1x128xf32>
      %150 = vector.shape_cast %149 : vector<2x1x128xf32> to vector<2x128xf32>
      %cst_49 = arith.constant dense<0.000000e+00> : vector<2x128xf32>
      %151 = vector.multi_reduction <add>, %148, %cst_49 [1] : vector<2x8x128xf32> to vector<2x128xf32>
      %cst_50 = arith.constant 8.000000e+00 : f32
      %152 = vector.broadcast %cst_50 : f32 to vector<2x128xf32>
      %153 = arith.divf %151, %152 : vector<2x128xf32>
      %154 = arith.truncf %150 : vector<2x128xf32> to vector<2x128xbf16>
      %c0_51 = arith.constant 0 : index
      %c0_52 = arith.constant 0 : index
      %155 = vector.load %arg4[%c0_51, %c0_52] : memref<128x128xbf16, #tpu.memory_space<vmem>>, vector<128x128xbf16>
      %cst_53 = arith.constant dense<0.000000e+00> : vector<2x128xf32>
      %156 = tpu.matmul %154, %155, %cst_53 {dimension_numbers = #tpu.dot_dimension_numbers<[1], [0], [0], [1], [0, 0, 1, 1], [], []>} : vector<2x128xbf16>, vector<128x128xbf16>, vector<2x128xf32> -> vector<2x128xf32>
      %c0_54 = arith.constant 0 : index
      %c0_55 = arith.constant 0 : index
      %157 = vector.load %arg3[%c0_54, %c0_55] : memref<8x128xf32, #tpu.memory_space<vmem>>, vector<1x128xf32>
      %158 = vector.broadcast %157 : vector<1x128xf32> to vector<2x128xf32>
      %159 = arith.addf %156, %158 : vector<2x128xf32>
      %160 = math.tanh %159 : vector<2x128xf32>
      %161 = tpu.concatenate %160, %153 in 1 : vector<2x128xf32>, vector<2x128xf32> -> vector<2x256xf32>
      %c0_56 = arith.constant 0 : index
      %c0_57 = arith.constant 0 : index
      %162 = vector.load %arg12[%c0_56, %c0_57] : memref<2x256xf32, #tpu.memory_space<vmem>>, vector<2x256xf32>
      tpu.vector_store %arg12[%c0_56, %c0_57], %161 {strides = array<i32>} : memref<2x256xf32, #tpu.memory_space<vmem>>, vector<2x256xf32>,
      %163 = arith.truncf %161 : vector<2x256xf32> to vector<2x256xbf16>
      %c0_58 = arith.constant 0 : index
      %c0_59 = arith.constant 0 : index
      %164 = vector.load %arg5[%c0_58, %c0_59] : memref<256x128xbf16, #tpu.memory_space<vmem>>, vector<256x128xbf16>
      %cst_60 = arith.constant dense<0.000000e+00> : vector<2x128xf32>
      %165 = tpu.matmul %163, %164, %cst_60 {dimension_numbers = #tpu.dot_dimension_numbers<[1], [0], [0], [1], [0, 0, 1, 1], [], []>} : vector<2x256xbf16>, vector<256x128xbf16>, vector<2x128xf32> -> vector<2x128xf32>
      %c1 = arith.constant 1 : index
      %c0_61 = arith.constant 0 : index
      %166 = vector.load %arg3[%c1, %c0_61] : memref<8x128xf32, #tpu.memory_space<vmem>>, vector<1x128xf32>
      %167 = vector.broadcast %166 : vector<1x128xf32> to vector<2x128xf32>
      %168 = arith.addf %165, %167 : vector<2x128xf32>
      %c0_62 = arith.constant 0 : index
      %c0_63 = arith.constant 0 : index
      %169 = vector.load %arg11[%c0_62, %c0_63] : memref<2x128xf32, #tpu.memory_space<vmem>>, vector<2x128xf32>
      tpu.vector_store %arg11[%c0_62, %c0_63], %168 {strides = array<i32>} : memref<2x128xf32, #tpu.memory_space<vmem>>, vector<2x128xf32>,
    } else {
    }
    return
  }
  func.func @transform_0(%arg0: i32) -> (i32, i32) {
    %c0_i32 = arith.constant 0 : i32
    %c0_i32_0 = arith.constant 0 : i32
    %c0_i32_1 = arith.constant 0 : i32
    return %c0_i32, %c0_i32_0 : i32, i32
  }
  func.func @transform_1(%arg0: i32) -> (i32, i32) {
    %c0_i32 = arith.constant 0 : i32
    %c0_i32_0 = arith.constant 0 : i32
    %c0_i32_1 = arith.constant 0 : i32
    return %c0_i32, %c0_i32_0 : i32, i32
  }
  func.func @transform_2(%arg0: i32) -> (i32, i32) {
    %c0_i32 = arith.constant 0 : i32
    %c0_i32_0 = arith.constant 0 : i32
    %c0_i32_1 = arith.constant 0 : i32
    return %c0_i32, %c0_i32_0 : i32, i32
  }
  func.func @transform_3(%arg0: i32) -> (i32, i32) {
    %c0_i32 = arith.constant 0 : i32
    %c0_i32_0 = arith.constant 0 : i32
    %c0_i32_1 = arith.constant 0 : i32
    return %c0_i32, %c0_i32_0 : i32, i32
  }
  func.func @transform_4(%arg0: i32) -> (i32, i32) {
    %c0_i32 = arith.constant 0 : i32
    %c0_i32_0 = arith.constant 0 : i32
    %c0_i32_1 = arith.constant 0 : i32
    return %c0_i32, %c0_i32_0 : i32, i32
  }
  func.func @transform_5(%arg0: i32) -> (i32, i32, i32) {
    %c0_i32 = arith.constant 0 : i32
    %c0_i32_0 = arith.constant 0 : i32
    %c0_i32_1 = arith.constant 0 : i32
    return %arg0, %c0_i32, %c0_i32_0 : i32, i32, i32
  }
  func.func @transform_6(%arg0: i32) -> (i32, i32, i32) {
    %c0_i32 = arith.constant 0 : i32
    %c0_i32_0 = arith.constant 0 : i32
    %c0_i32_1 = arith.constant 0 : i32
    return %arg0, %c0_i32, %c0_i32_0 : i32, i32, i32
  }
  func.func @transform_7(%arg0: i32) -> (i32, i32, i32) {
    %c0_i32 = arith.constant 0 : i32
    %c0_i32_0 = arith.constant 0 : i32
    %c0_i32_1 = arith.constant 0 : i32
    return %arg0, %c0_i32, %c0_i32_0 : i32, i32, i32
  }
  func.func @transform_8(%arg0: i32) -> (i32, i32, i32) {
    %c0_i32 = arith.constant 0 : i32
    %c0_i32_0 = arith.constant 0 : i32
    %c0_i32_1 = arith.constant 0 : i32
    return %arg0, %c0_i32, %c0_i32_0 : i32, i32, i32
  }
  func.func @transform_9(%arg0: i32) -> (i32, i32, i32) {
    %c0_i32 = arith.constant 0 : i32
    %c0_i32_0 = arith.constant 0 : i32
    %c0_i32_1 = arith.constant 0 : i32
    return %arg0, %c0_i32, %c0_i32_0 : i32, i32, i32
  }
  func.func @transform_10(%arg0: i32) -> (i32, i32) {
    %c0_i32 = arith.constant 0 : i32
    %c0_i32_0 = arith.constant 0 : i32
    %c0_i32_1 = arith.constant 0 : i32
    return %c0_i32, %c0_i32_0 : i32, i32
  }
  func.func @transform_11(%arg0: i32) -> (i32, i32) {
    %c0_i32 = arith.constant 0 : i32
    %c0_i32_0 = arith.constant 0 : i32
    %c0_i32_1 = arith.constant 0 : i32
    return %c0_i32, %c0_i32_0 : i32, i32
  }
}

</mosaic_0001>

<llo_original>
// kernel: roberta_forward.1
$region0: #{roberta_forward.1}
  #allocation0 [shape = 'u32[]', space=smem, size = 0x4, offset = 0x4, fixed_abs, tag = 'smem constant byte address 0x4 - core index']
  #allocation1 [shape = 'u32[72,128]{1,0:T(1,128)}', space=vmem, size = 0x9000, scoped, tag = 'internal scratch']
  #allocation2 [shape = 'f32[16,128]{1,0:T(8,128)}', space=vmem, size = 0x2000, scoped, tag = 'scratch operand']
  %s0 = inlined_call_operand.vmem [shape: f32[16,128], index: 0, kind: input, shape index: {}]
  %s1 = inlined_call_operand.vmem [shape: f32[16,16], index: 1, kind: input, shape index: {}]
  %s2 = inlined_call_operand.vmem [shape: f32[8,128], index: 2, kind: input, shape index: {}]
  %s3 = inlined_call_operand.vmem [shape: bf16[128,128], index: 3, kind: input, shape index: {}]
  %s4 = inlined_call_operand.vmem [shape: bf16[256,128], index: 4, kind: input, shape index: {}]
  %s5 = inlined_call_operand.hbm [shape: bf16[2,128,384], index: 5, kind: input, shape index: {}]
  %s6 = inlined_call_operand.vmem [shape: bf16[2,128,128], index: 6, kind: input, shape index: {}]
  %s7 = inlined_call_operand.hbm [shape: bf16[2,128,512], index: 7, kind: input, shape index: {}]
  %s8 = inlined_call_operand.hbm [shape: bf16[2,512,128], index: 8, kind: input, shape index: {}]
  %s9 = inlined_call_operand.hbm [shape: f32[2,8,512], index: 9, kind: input, shape index: {}]
  %s10 = inlined_call_operand.hbm [shape: f32[2,128], index: 10, kind: output, shape index: {0}]
  %s11 = inlined_call_operand.hbm [shape: f32[2,256], index: 11, kind: output, shape index: {1}]
  %12 = xla_tuple %s10, %s11
  %s13 = sld [smem:[#allocation0]]
  $region105: #{roberta_forward.1} parent=0
    _
  %s15 = ssub.s32 1, %s13
  %s16 = scalar_select 0, %s15, %s13
  $region1: #{roberta_forward.1} parent=0
    #allocation3 [shape = 'u8[196608]{0}', space=vmem, size = 0x30000, scoped, tag = 'input window, operand 5']
    #allocation4 [shape = 's32[2]{0}', space=sflag, size = 0x8, scoped, tag = 'scoped memory for roberta_forward.1']
    #allocation5 [shape = 's32[2]{0}', space=sflag, size = 0x8, scoped, tag = 'scoped memory for roberta_forward.1']
    #allocation6 [shape = 'u8[262144]{0}', space=vmem, size = 0x40000, scoped, tag = 'input window, operand 7']
    #allocation7 [shape = 's32[2]{0}', space=sflag, size = 0x8, scoped, tag = 'scoped memory for roberta_forward.1']
    #allocation8 [shape = 'u8[262144]{0}', space=vmem, size = 0x40000, scoped, tag = 'input window, operand 8']
    #allocation9 [shape = 'u8[32768]{0}', space=vmem, size = 0x8000, scoped, tag = 'input window, operand 9']
    #allocation10 [shape = 's32[2]{0}', space=sflag, size = 0x8, scoped, tag = 'scoped memory for roberta_forward.1']
    #allocation11 [shape = 'u8[1024]{0}', space=vmem, size = 0x400, scoped, tag = 'output window, operand 0, single buffered']
    #allocation12 [shape = 'u8[2048]{0}', space=vmem, size = 0x800, scoped, tag = 'output window, operand 1, single buffered']
    #allocation13 [shape = 's32[1]{0}', space=sflag, size = 0x4, scoped, tag = 'scoped memory for roberta_forward.1']
    %17 = vsyncpa [#allocation4], 0
    %s18 = scalar_lea.sflag [#allocation4], 1
    %19 = vsyncpa %s18, 0
    %20 = vsyncpa [#allocation7], 0
    %s21 = scalar_lea.sflag [#allocation7], 1
    %22 = vsyncpa %s21, 0
    %23 = vsyncpa [#allocation10], 0
    %s24 = scalar_lea.sflag [#allocation10], 1
    %25 = vsyncpa %s24, 0
    %26 = vsyncpa [#allocation5], 0
    %27 = vsyncpa [#allocation13], 0
    loop: start=0, step=1, limit=4
    $region2: #{roberta_forward.1} parent=1 // loop_pre_header
      _
    $region3: #{roberta_forward.1} parent=1 // loop_header
      %s29 = sphi 0, %s33
      %p30 = scmp.ge.s32.totalorder %s29, 4
      %s37 = sphi 0, %s37
      %s39 = sphi 0, %s37
      %s40 = sphi 0, %s39
      %s54 = sphi 0, %s40
      %s58 = sphi 0, %s58
      %s60 = sphi 0, %s58
      %s61 = sphi 0, %s60
      %s75 = sphi 0, %s61
      %s79 = sphi 0, %s79
      %s81 = sphi 0, %s79
      %s82 = sphi 0, %s81
      %s96 = sphi 0, %s82
      %s100 = sphi 0, %s100
      %s102 = sphi 0, %s100
      %s103 = sphi 0, %s102
      %s117 = sphi 0, %s103
      %s121 = sphi 0, %s121
      %s123 = sphi 0, %s121
      %s124 = sphi 0, %s123
      %s138 = sphi 0, %s124
      %s144 = sphi 0, %s146
      %s147 = sphi 0, %s144
      %s148 = sphi 0, %s147
      %s164 = sphi 0, %s148
      %s170 = sphi 0, %s172
      %s173 = sphi 0, %s170
      %s174 = sphi 0, %s173
      %s190 = sphi 0, %s174
      %s196 = sphi 0, %s198
      %s199 = sphi 0, %s196
      %s200 = sphi 0, %s199
      %s216 = sphi 0, %s200
      %s222 = sphi 0, %s224
      %s225 = sphi 0, %s222
      %s226 = sphi 0, %s225
      %s242 = sphi 0, %s226
      %s248 = sphi 0, %s250
      %s251 = sphi 0, %s248
      %s252 = sphi 0, %s251
      %s268 = sphi 0, %s252
      %s272 = sphi 0, %s272
      %s274 = sphi 0, %s272
      %s275 = sphi 0, %s274
      %s289 = sphi 0, %s275
      %s293 = sphi 0, %s293
      %s295 = sphi 0, %s293
      %s296 = sphi 0, %s295
      %s310 = sphi 0, %s296
    $region4: #{roberta_forward.1} parent=1 // loop_header_branch
      %32 = sbr.rel (%p30) target = $region8
    $region5: #{roberta_forward.1} parent=1 // loop_body
      %s34 = ssub.s32 %s29, 1
      %s35 = ssub.s32 %s29, 2
      %s36 = sadd.s32 %s29, 1
      %s38 = sadd.s32 %s37, 1
      %p41 = scmp.eq.s32.totalorder %s29, 1
      %p42 = scmp.ne.s32.totalorder %s37, %s39
      %p43 = scmp.eq.s32.totalorder %s29, 0
      %p44 = por %p42, %p43
      %p45 = scmp.ne.s32.totalorder %s37, %s39
      %p46 = scmp.eq.s32.totalorder %s34, 1
      %p47 = por %p45, %p46
      %p48 = scmp.ne.s32.totalorder %s39, %s40
      %p49 = scmp.eq.s32.totalorder %s34, 0
      %p50 = por %p48, %p49
      %p51 = scmp.ne.s32.totalorder %s39, %s40
      %p52 = scmp.eq.s32.totalorder %s35, 1
      %p53 = por %p51, %p52
      %p55 = scmp.ne.s32.totalorder %s40, %s54
      %p56 = scmp.eq.s32.totalorder %s35, 0
      %p57 = por %p55, %p56
      %s59 = sadd.s32 %s58, 1
      %p62 = scmp.eq.s32.totalorder %s29, 1
      %p63 = scmp.ne.s32.totalorder %s58, %s60
      %p64 = scmp.eq.s32.totalorder %s29, 0
      %p65 = por %p63, %p64
      %p66 = scmp.ne.s32.totalorder %s58, %s60
      %p67 = scmp.eq.s32.totalorder %s34, 1
      %p68 = por %p66, %p67
      %p69 = scmp.ne.s32.totalorder %s60, %s61
      %p70 = scmp.eq.s32.totalorder %s34, 0
      %p71 = por %p69, %p70
      %p72 = scmp.ne.s32.totalorder %s60, %s61
      %p73 = scmp.eq.s32.totalorder %s35, 1
      %p74 = por %p72, %p73
      %p76 = scmp.ne.s32.totalorder %s61, %s75
      %p77 = scmp.eq.s32.totalorder %s35, 0
      %p78 = por %p76, %p77
      %s80 = sadd.s32 %s79, 1
      %p83 = scmp.eq.s32.totalorder %s29, 1
      %p84 = scmp.ne.s32.totalorder %s79, %s81
      %p85 = scmp.eq.s32.totalorder %s29, 0
      %p86 = por %p84, %p85
      %p87 = scmp.ne.s32.totalorder %s79, %s81
      %p88 = scmp.eq.s32.totalorder %s34, 1
      %p89 = por %p87, %p88
      %p90 = scmp.ne.s32.totalorder %s81, %s82
      %p91 = scmp.eq.s32.totalorder %s34, 0
      %p92 = por %p90, %p91
      %p93 = scmp.ne.s32.totalorder %s81, %s82
      %p94 = scmp.eq.s32.totalorder %s35, 1
      %p95 = por %p93, %p94
      %p97 = scmp.ne.s32.totalorder %s82, %s96
      %p98 = scmp.eq.s32.totalorder %s35, 0
      %p99 = por %p97, %p98
      %s101 = sadd.s32 %s100, 1
      %p104 = scmp.eq.s32.totalorder %s29, 1
      %p105 = scmp.ne.s32.totalorder %s100, %s102
      %p106 = scmp.eq.s32.totalorder %s29, 0
      %p107 = por %p105, %p106
      %p108 = scmp.ne.s32.totalorder %s100, %s102
      %p109 = scmp.eq.s32.totalorder %s34, 1
      %p110 = por %p108, %p109
      %p111 = scmp.ne.s32.totalorder %s102, %s103
      %p112 = scmp.eq.s32.totalorder %s34, 0
      %p113 = por %p111, %p112
      %p114 = scmp.ne.s32.totalorder %s102, %s103
      %p115 = scmp.eq.s32.totalorder %s35, 1
      %p116 = por %p114, %p115
      %p118 = scmp.ne.s32.totalorder %s103, %s117
      %p119 = scmp.eq.s32.totalorder %s35, 0
      %p120 = por %p118, %p119
      %s122 = sadd.s32 %s121, 1
      %p125 = scmp.eq.s32.totalorder %s29, 1
      %p126 = scmp.ne.s32.totalorder %s121, %s123
      %p127 = scmp.eq.s32.totalorder %s29, 0
      %p128 = por %p126, %p127
      %p129 = scmp.ne.s32.totalorder %s121, %s123
      %p130 = scmp.eq.s32.totalorder %s34, 1
      %p131 = por %p129, %p130
      %p132 = scmp.ne.s32.totalorder %s123, %s124
      %p133 = scmp.eq.s32.totalorder %s34, 0
      %p134 = por %p132, %p133
      %p135 = scmp.ne.s32.totalorder %s123, %s124
      %p136 = scmp.eq.s32.totalorder %s35, 1
      %p137 = por %p135, %p136
      %p139 = scmp.ne.s32.totalorder %s124, %s138
      %p140 = scmp.eq.s32.totalorder %s35, 0
      %p141 = por %p139, %p140
      %s142 = ssub.s32 %s29, %s36
      %p143 = scmp.eq.s32.totalorder %s142, 0
      %s145 = sadd.s32 %s144, 1
      %s146 = scalar_select %p143, %s144, %s145
      %p149 = pneg %p143
      %p150 = scmp.eq.s32.totalorder %s29, 1
      %p151 = por %p149, %p150
      %p152 = scmp.ne.s32.totalorder %s144, %s147
      %p153 = scmp.eq.s32.totalorder %s29, 0
      %p154 = por %p152, %p153
      %p155 = scmp.ne.s32.totalorder %s144, %s147
      %p156 = scmp.eq.s32.totalorder %s34, 1
      %p157 = por %p155, %p156
      %p158 = scmp.ne.s32.totalorder %s147, %s148
      %p159 = scmp.eq.s32.totalorder %s34, 0
      %p160 = por %p158, %p159
      %p161 = scmp.ne.s32.totalorder %s147, %s148
      %p162 = scmp.eq.s32.totalorder %s35, 1
      %p163 = por %p161, %p162
      %p165 = scmp.ne.s32.totalorder %s148, %s164
      %p166 = scmp.eq.s32.totalorder %s35, 0
      %p167 = por %p165, %p166
      %s168 = ssub.s32 %s29, %s36
      %p169 = scmp.eq.s32.totalorder %s168, 0
      %s171 = sadd.s32 %s170, 1
      %s172 = scalar_select %p169, %s170, %s171
      %p175 = pneg %p169
      %p176 = scmp.eq.s32.totalorder %s29, 1
      %p177 = por %p175, %p176
      %p178 = scmp.ne.s32.totalorder %s170, %s173
      %p179 = scmp.eq.s32.totalorder %s29, 0
      %p180 = por %p178, %p179
      %p181 = scmp.ne.s32.totalorder %s170, %s173
      %p182 = scmp.eq.s32.totalorder %s34, 1
      %p183 = por %p181, %p182
      %p184 = scmp.ne.s32.totalorder %s173, %s174
      %p185 = scmp.eq.s32.totalorder %s34, 0
      %p186 = por %p184, %p185
      %p187 = scmp.ne.s32.totalorder %s173, %s174
      %p188 = scmp.eq.s32.totalorder %s35, 1
      %p189 = por %p187, %p188
      %p191 = scmp.ne.s32.totalorder %s174, %s190
      %p192 = scmp.eq.s32.totalorder %s35, 0
      %p193 = por %p191, %p192
      %s194 = ssub.s32 %s29, %s36
      %p195 = scmp.eq.s32.totalorder %s194, 0
      %s197 = sadd.s32 %s196, 1
      %s198 = scalar_select %p195, %s196, %s197
      %p201 = pneg %p195
      %p202 = scmp.eq.s32.totalorder %s29, 1
      %p203 = por %p201, %p202
      %p204 = scmp.ne.s32.totalorder %s196, %s199
      %p205 = scmp.eq.s32.totalorder %s29, 0
      %p206 = por %p204, %p205
      %p207 = scmp.ne.s32.totalorder %s196, %s199
      %p208 = scmp.eq.s32.totalorder %s34, 1
      %p209 = por %p207, %p208
      %p210 = scmp.ne.s32.totalorder %s199, %s200
      %p211 = scmp.eq.s32.totalorder %s34, 0
      %p212 = por %p210, %p211
      %p213 = scmp.ne.s32.totalorder %s199, %s200
      %p214 = scmp.eq.s32.totalorder %s35, 1
      %p215 = por %p213, %p214
      %p217 = scmp.ne.s32.totalorder %s200, %s216
      %p218 = scmp.eq.s32.totalorder %s35, 0
      %p219 = por %p217, %p218
      %s220 = ssub.s32 %s29, %s36
      %p221 = scmp.eq.s32.totalorder %s220, 0
      %s223 = sadd.s32 %s222, 1
      %s224 = scalar_select %p221, %s222, %s223
      %p227 = pneg %p221
      %p228 = scmp.eq.s32.totalorder %s29, 1
      %p229 = por %p227, %p228
      %p230 = scmp.ne.s32.totalorder %s222, %s225
      %p231 = scmp.eq.s32.totalorder %s29, 0
      %p232 = por %p230, %p231
      %p233 = scmp.ne.s32.totalorder %s222, %s225
      %p234 = scmp.eq.s32.totalorder %s34, 1
      %p235 = por %p233, %p234
      %p236 = scmp.ne.s32.totalorder %s225, %s226
      %p237 = scmp.eq.s32.totalorder %s34, 0
      %p238 = por %p236, %p237
      %p239 = scmp.ne.s32.totalorder %s225, %s226
      %p240 = scmp.eq.s32.totalorder %s35, 1
      %p241 = por %p239, %p240
      %p243 = scmp.ne.s32.totalorder %s226, %s242
      %p244 = scmp.eq.s32.totalorder %s35, 0
      %p245 = por %p243, %p244
      %s246 = ssub.s32 %s29, %s36
      %p247 = scmp.eq.s32.totalorder %s246, 0
      %s249 = sadd.s32 %s248, 1
      %s250 = scalar_select %p247, %s248, %s249
      %p253 = pneg %p247
      %p254 = scmp.eq.s32.totalorder %s29, 1
      %p255 = por %p253, %p254
      %p256 = scmp.ne.s32.totalorder %s248, %s251
      %p257 = scmp.eq.s32.totalorder %s29, 0
      %p258 = por %p256, %p257
      %p259 = scmp.ne.s32.totalorder %s248, %s251
      %p260 = scmp.eq.s32.totalorder %s34, 1
      %p261 = por %p259, %p260
      %p262 = scmp.ne.s32.totalorder %s251, %s252
      %p263 = scmp.eq.s32.totalorder %s34, 0
      %p264 = por %p262, %p263
      %p265 = scmp.ne.s32.totalorder %s251, %s252
      %p266 = scmp.eq.s32.totalorder %s35, 1
      %p267 = por %p265, %p266
      %p269 = scmp.ne.s32.totalorder %s252, %s268
      %p270 = scmp.eq.s32.totalorder %s35, 0
      %p271 = por %p269, %p270
      %s273 = sadd.s32 %s272, 1
      %p276 = scmp.eq.s32.totalorder %s29, 1
      %p277 = scmp.ne.s32.totalorder %s272, %s274
      %p278 = scmp.eq.s32.totalorder %s29, 0
      %p279 = por %p277, %p278
      %p280 = scmp.ne.s32.totalorder %s272, %s274
      %p281 = scmp.eq.s32.totalorder %s34, 1
      %p282 = por %p280, %p281
      %p283 = scmp.ne.s32.totalorder %s274, %s275
      %p284 = scmp.eq.s32.totalorder %s34, 0
      %p285 = por %p283, %p284
      %p286 = scmp.ne.s32.totalorder %s274, %s275
      %p287 = scmp.eq.s32.totalorder %s35, 1
      %p288 = por %p286, %p287
      %p290 = scmp.ne.s32.totalorder %s275, %s289
      %p291 = scmp.eq.s32.totalorder %s35, 0
      %p292 = por %p290, %p291
      %s294 = sadd.s32 %s293, 1
      %p297 = scmp.eq.s32.totalorder %s29, 1
      %p298 = scmp.ne.s32.totalorder %s293, %s295
      %p299 = scmp.eq.s32.totalorder %s29, 0
      %p300 = por %p298, %p299
      %p301 = scmp.ne.s32.totalorder %s293, %s295
      %p302 = scmp.eq.s32.totalorder %s34, 1
      %p303 = por %p301, %p302
      %p304 = scmp.ne.s32.totalorder %s295, %s296
      %p305 = scmp.eq.s32.totalorder %s34, 0
      %p306 = por %p304, %p305
      %p307 = scmp.ne.s32.totalorder %s295, %s296
      %p308 = scmp.eq.s32.totalorder %s35, 1
      %p309 = por %p307, %p308
      %p311 = scmp.ne.s32.totalorder %s296, %s310
      %p312 = scmp.eq.s32.totalorder %s35, 0
      %p313 = por %p311, %p312
      %p314 = scmp.le.s32.totalorder 1, %s29
      %p315 = scmp.lt.s32.totalorder %s29, 3
      %p316 = pnand %p314, %p315
      %p317 = pneg %p316
      // Predicated region
      $region9: #{roberta_forward.1} parent=5 // pred_check
        _
      $region10: #{roberta_forward.1} parent=5 // pred_check_branch
        %319 = sbr.rel (%p316) target = $region12
      $region11: #{roberta_forward.1} parent=5 // pred_region
        %s320 = ssub.s32 %s29, 1
        // Predicated region
        $region13: #{roberta_forward.1} parent=11 // pred_check
          %p321 = pneg %p50
        $region14: #{roberta_forward.1} parent=11 // pred_check_branch
          %323 = sbr.rel (%p321) target = $region16
        $region15: #{roberta_forward.1} parent=11 // pred_region
          _
        $region16: #{roberta_forward.1} parent=11 // pred_fallthru
          _
        // Predicated region
        $region17: #{roberta_forward.1} parent=11 // pred_check
          %p324 = pneg %p71
        $region18: #{roberta_forward.1} parent=11 // pred_check_branch
          %326 = sbr.rel (%p324) target = $region20
        $region19: #{roberta_forward.1} parent=11 // pred_region
          _
        $region20: #{roberta_forward.1} parent=11 // pred_fallthru
          _
        // Predicated region
        $region21: #{roberta_forward.1} parent=11 // pred_check
          %p327 = pneg %p92
        $region22: #{roberta_forward.1} parent=11 // pred_check_branch
          %329 = sbr.rel (%p327) target = $region24
        $region23: #{roberta_forward.1} parent=11 // pred_region
          _
        $region24: #{roberta_forward.1} parent=11 // pred_fallthru
          _
        // Predicated region
        $region25: #{roberta_forward.1} parent=11 // pred_check
          %p330 = pneg %p113
        $region26: #{roberta_forward.1} parent=11 // pred_check_branch
          %332 = sbr.rel (%p330) target = $region28
        $region27: #{roberta_forward.1} parent=11 // pred_region
          _
        $region28: #{roberta_forward.1} parent=11 // pred_fallthru
          _
        // Predicated region
        $region29: #{roberta_forward.1} parent=11 // pred_check
          %p333 = pneg %p134
        $region30: #{roberta_forward.1} parent=11 // pred_check_branch
          %335 = sbr.rel (%p333) target = $region32
        $region31: #{roberta_forward.1} parent=11 // pred_region
          _
        $region32: #{roberta_forward.1} parent=11 // pred_fallthru
          _
      $region12: #{roberta_forward.1} parent=5 // pred_fallthru
        _
      %p336 = scmp.lt.s32.totalorder %s29, 2
      // Predicated region
      $region33: #{roberta_forward.1} parent=5 // pred_check
        %p337 = pneg %p336
      $region34: #{roberta_forward.1} parent=5 // pred_check_branch
        %339 = sbr.rel (%p337) target = $region36
      $region35: #{roberta_forward.1} parent=5 // pred_region
        // Predicated region
        $region37: #{roberta_forward.1} parent=35 // pred_check
          %p340 = pneg %p154
        $region38: #{roberta_forward.1} parent=35 // pred_check_branch
          %342 = sbr.rel (%p340) target = $region40
        $region39: #{roberta_forward.1} parent=35 // pred_region
          %s343 = sand.u32 %s144, 1
          %s344 = scalar_lea.sflag [#allocation4], %s343
          %s345 = sand.u32 %s144, 1
          %s346 = smul.addr %s345, 192
          %s347 = scalar_lea.vmem [#allocation3], %s346
          %349 = vsyncadd %s344, 0
          %s350 = smul.addr %s29, 48
          %s351 = smul.addr %s350, 4
          %s352 = scalar_lea.hbm %s5, %s351
          %s353 = sshll.u32 %s352, 4
          %s354 = int_to_ptr.hbm [resolvable:$true] %s353
          %s355 = sshll.u32 %s347, 4
          %s356 = int_to_ptr.vmem [resolvable:$true] %s355
          %361 = dma.hbm_to_vmem [thread:$0]  %s354, 3072, %s356, %s344, 192, 192, 12
        $region40: #{roberta_forward.1} parent=35 // pred_fallthru
          _
        // Predicated region
        $region41: #{roberta_forward.1} parent=35 // pred_check
          %p362 = pneg %p180
        $region42: #{roberta_forward.1} parent=35 // pred_check_branch
          %364 = sbr.rel (%p362) target = $region44
        $region43: #{roberta_forward.1} parent=35 // pred_region
          %p365 = scmp.lt.s32.totalorder %s29, 1
          %s366 = scalar_select %p365, %s29, 1
          %s367 = smul.addr %s366, 16
          %s368 = smul.addr %s367, 4
          %s369 = scalar_lea.vmem %s6, %s368
        $region44: #{roberta_forward.1} parent=35 // pred_fallthru
          _
        // Predicated region
        $region45: #{roberta_forward.1} parent=35 // pred_check
          %p370 = pneg %p206
        $region46: #{roberta_forward.1} parent=35 // pred_check_branch
          %372 = sbr.rel (%p370) target = $region48
        $region47: #{roberta_forward.1} parent=35 // pred_region
          %s373 = sand.u32 %s29, 1
          %s374 = scalar_lea.sflag [#allocation7], %s373
          %s375 = sand.u32 %s196, 1
          %s376 = smul.addr %s375, 256
          %s377 = scalar_lea.vmem [#allocation6], %s376
          %379 = vsyncadd %s374, 0
          %s380 = smul.addr %s29, 64
          %s381 = smul.addr %s380, 4
          %s382 = scalar_lea.hbm %s7, %s381
          %s383 = sshll.u32 %s382, 4
          %s384 = int_to_ptr.hbm [resolvable:$true] %s383
          %s385 = sshll.u32 %s377, 4
          %s386 = int_to_ptr.vmem [resolvable:$true] %s385
          %391 = dma.hbm_to_vmem [thread:$0]  %s384, 4096, %s386, %s374, 256, 256, 16
        $region48: #{roberta_forward.1} parent=35 // pred_fallthru
          _
        // Predicated region
        $region49: #{roberta_forward.1} parent=35 // pred_check
          %p392 = pneg %p232
        $region50: #{roberta_forward.1} parent=35 // pred_check_branch
          %394 = sbr.rel (%p392) target = $region52
        $region51: #{roberta_forward.1} parent=35 // pred_region
          %s395 = sand.u32 %s29, 1
          %s396 = scalar_lea.sflag [#allocation7], %s395
          %s397 = sand.u32 %s222, 1
          %s398 = smul.addr %s397, 256
          %s399 = scalar_lea.vmem [#allocation8], %s398
          %401 = vsyncadd %s396, 0
          %s402 = smul.addr %s29, 64
          %s403 = smul.addr %s402, 4
          %s404 = scalar_lea.hbm %s8, %s403
          %s405 = sshll.u32 %s404, 4
          %s406 = int_to_ptr.hbm [resolvable:$true] %s405
          %s407 = sshll.u32 %s399, 4
          %s408 = int_to_ptr.vmem [resolvable:$true] %s407
          %413 = dma.hbm_to_vmem [thread:$0]  %s406, 4096, %s408, %s396, 64, 64, 4
        $region52: #{roberta_forward.1} parent=35 // pred_fallthru
          _
        // Predicated region
        $region53: #{roberta_forward.1} parent=35 // pred_check
          %p414 = pneg %p258
        $region54: #{roberta_forward.1} parent=35 // pred_check_branch
          %416 = sbr.rel (%p414) target = $region56
        $region55: #{roberta_forward.1} parent=35 // pred_region
          %s417 = sand.u32 %s248, 1
          %s418 = scalar_lea.sflag [#allocation10], %s417
          %s419 = sand.u32 %s248, 1
          %s420 = smul.addr %s419, 32
          %s421 = scalar_lea.vmem [#allocation9], %s420
          %423 = vsyncadd %s418, 0
          %s424 = smul.addr %s29, 4
          %s425 = smul.addr %s424, 8
          %s426 = scalar_lea.hbm %s9, %s425
          %s428 = sshll.u32 %s426, 4
          %s429 = int_to_ptr.hbm [resolvable:$true] %s428
          %s430 = sshll.u32 %s421, 4
          %s431 = int_to_ptr.vmem [resolvable:$true] %s430
          %433 = dma.hbm_to_vmem [thread:$0]  %s429, 512, %s431, %s418
        $region56: #{roberta_forward.1} parent=35 // pred_fallthru
          _
      $region36: #{roberta_forward.1} parent=5 // pred_fallthru
        _
      %p434 = scmp.le.s32.totalorder 1, %s29
      %p435 = scmp.lt.s32.totalorder %s29, 3
      %p436 = pnand %p434, %p435
      %p437 = pneg %p436
      // Predicated region
      $region57: #{roberta_forward.1} parent=5 // pred_check
        _
      $region58: #{roberta_forward.1} parent=5 // pred_check_branch
        %439 = sbr.rel (%p436) target = $region60
      $region59: #{roberta_forward.1} parent=5 // pred_region
        %s440 = ssub.s32 %s29, 1
        %s441 = sand.u32 %s147, 1
        %s442 = scalar_lea.sflag [#allocation4], %s441
        %s443 = sand.u32 %s147, 1
        %s444 = smul.addr %s443, 192
        %s445 = scalar_lea.vmem [#allocation3], %s444
        // Predicated region
        $region61: #{roberta_forward.1} parent=59 // pred_check
          %p446 = pneg %p160
        $region62: #{roberta_forward.1} parent=59 // pred_check_branch
          %448 = sbr.rel (%p446) target = $region64
        $region63: #{roberta_forward.1} parent=59 // pred_region
          %450 = dma.done %s442, 3072
        $region64: #{roberta_forward.1} parent=59 // pred_fallthru
          _
        %s451 = sand.u32 %s34, 1
        %s452 = scalar_lea.sflag [#allocation7], %s451
        %s453 = sand.u32 %s199, 1
        %s454 = smul.addr %s453, 256
        %s455 = scalar_lea.vmem [#allocation6], %s454
        // Predicated region
        $region65: #{roberta_forward.1} parent=59 // pred_check
          %p456 = pneg %p212
        $region66: #{roberta_forward.1} parent=59 // pred_check_branch
          %458 = sbr.rel (%p456) target = $region68
        $region67: #{roberta_forward.1} parent=59 // pred_region
          %460 = dma.done %s452, 4096
        $region68: #{roberta_forward.1} parent=59 // pred_fallthru
          _
        %s461 = sand.u32 %s34, 1
        %s462 = scalar_lea.sflag [#allocation7], %s461
        %s463 = sand.u32 %s225, 1
        %s464 = smul.addr %s463, 256
        %s465 = scalar_lea.vmem [#allocation8], %s464
        // Predicated region
        $region69: #{roberta_forward.1} parent=59 // pred_check
          %p466 = pneg %p238
        $region70: #{roberta_forward.1} parent=59 // pred_check_branch
          %468 = sbr.rel (%p466) target = $region72
        $region71: #{roberta_forward.1} parent=59 // pred_region
          %470 = dma.done %s462, 4096
        $region72: #{roberta_forward.1} parent=59 // pred_fallthru
          _
        %s471 = sand.u32 %s251, 1
        %s472 = scalar_lea.sflag [#allocation10], %s471
        %s473 = sand.u32 %s251, 1
        %s474 = smul.addr %s473, 32
        %s475 = scalar_lea.vmem [#allocation9], %s474
        // Predicated region
        $region73: #{roberta_forward.1} parent=59 // pred_check
          %p476 = pneg %p264
        $region74: #{roberta_forward.1} parent=59 // pred_check_branch
          %478 = sbr.rel (%p476) target = $region76
        $region75: #{roberta_forward.1} parent=59 // pred_region
          %480 = dma.done %s472, 512
        $region76: #{roberta_forward.1} parent=59 // pred_fallthru
          _
        %p481 = pneg %p50
        %p482 = pneg %p47
        %p483 = pneg %p71
        %p484 = pneg %p68
        %p485 = pneg %p92
        %p486 = pneg %p89
        %p487 = pneg %p113
        %p488 = pneg %p110
        %p489 = pneg %p134
        %p490 = pneg %p131
        %s491 = sand.u32 %s147, 1
        %s492 = scalar_lea.sflag [#allocation4], %s491
        %s493 = sand.u32 %s147, 1
        %s494 = smul.addr %s493, 192
        %s495 = scalar_lea.vmem [#allocation3], %s494
        %p496 = pneg %p160
        %p497 = pneg %p157
        %p498 = scmp.lt.s32.totalorder %s34, 1
        %s499 = scalar_select %p498, %s34, 1
        %s500 = smul.addr %s499, 16
        %s501 = smul.addr %s500, 4
        %s502 = scalar_lea.vmem %s6, %s501
        %p503 = pneg %p186
        %p504 = pneg %p183
        %s505 = sand.u32 %s34, 1
        %s506 = scalar_lea.sflag [#allocation7], %s505
        %s507 = sand.u32 %s199, 1
        %s508 = smul.addr %s507, 256
        %s509 = scalar_lea.vmem [#allocation6], %s508
        %p510 = pneg %p212
        %p511 = pneg %p209
        %s512 = sand.u32 %s34, 1
        %s513 = scalar_lea.sflag [#allocation7], %s512
        %s514 = sand.u32 %s225, 1
        %s515 = smul.addr %s514, 256
        %s516 = scalar_lea.vmem [#allocation8], %s515
        %p517 = pneg %p238
        %p518 = pneg %p235
        %s519 = sand.u32 %s251, 1
        %s520 = scalar_lea.sflag [#allocation10], %s519
        %s521 = sand.u32 %s251, 1
        %s522 = smul.addr %s521, 32
        %s523 = scalar_lea.vmem [#allocation9], %s522
        %p524 = pneg %p264
        %p525 = pneg %p261
        %p526 = pneg %p285
        %p527 = pneg %p282
        %p528 = pneg %p306
        %p529 = pneg %p303
        %p530 = scmp.lt.s32.totalorder %s34, 1
        %s531 = scalar_select %p530, %s34, 1
        %s532 = smul.addr %s531, 16
        %s533 = smul.addr %s532, 4
        %s534 = scalar_lea.vmem %s6, %s533
        %p535 = scmp.eq.s32.totalorder %s34, 0
        // Predicated region
        $region77: #{roberta_forward.1} parent=59 // pred_check
          %p536 = pneg %p535
        $region78: #{roberta_forward.1} parent=59 // pred_check_branch
          %538 = sbr.rel (%p536) target = $region80
        $region79: #{roberta_forward.1} parent=59 // pred_region
          %v539 = vld [vmem:[%s0] sm:$0xff]
          %v540 = vld [vmem:[%s0 + $0x8] sm:$0xff]
          %v541 = vld [vmem:[%s2 + $0x2] sm:$0x1]
          %v542 = vld [vmem:[%s2 + $0x3] sm:$0x1]
          %543 = vadd.xlane.f32.xlu0 %v539
          %v544 = vpop.xlane.xlu0 %543
          %545 = vadd.xlane.f32.xlu0 %v540
          %v546 = vpop.xlane.xlu0 %545
          %v547 = vrcp.pop 128.0
          %v548 = vmul.f32 128.0, %v547
          %v549 = vsub.f32 1.0, %v548
          %v550 = vmul.f32 %v547, %v549
          %v551 = vadd.f32 %v547, %v550
          %vm552 = vweird.f32 %v547
          %v553 = vsel %vm552, %v547, %v551
          %v554 = vmul.f32 %v544, %v553
          %v555 = vmul.f32 %v546, %v553
          %v556 = vsub.f32 %v539, %v554
          %v557 = vsub.f32 %v540, %v555
          %v558 = vmul.f32 %v556, %v556
          %v559 = vmul.f32 %v557, %v557
          %560 = vadd.xlane.f32.xlu0 %v558
          %v561 = vpop.xlane.xlu0 %560
          %562 = vadd.xlane.f32.xlu0 %v559
          %v563 = vpop.xlane.xlu0 %562
          %v564 = vmul.f32 %v561, %v553
          %v565 = vmul.f32 %v563, %v553
          %v566 = vadd.f32 %v564, 1e-12
          %v567 = vadd.f32 %v565, 1e-12
          %v568 = vrsqrt.pop %v566
          %v569 = vmul.f32 %v568, %v566
          %v570 = vmul.f32 %v569, %v568
          %v571 = vmul.f32 0.5, %v570
          %v572 = vsub.f32 1.5, %v571
          %v573 = vmul.f32 %v568, %v572
          %vm574 = vweird.f32 %v566
          %vm575 = vweird.f32 %v568
          %vm576 = vmor %vm574, %vm575
          %v577 = vsel %vm576, %v568, %v573
          %v578 = vrsqrt.pop %v567
          %v579 = vmul.f32 %v578, %v567
          %v580 = vmul.f32 %v579, %v578
          %v581 = vmul.f32 0.5, %v580
          %v582 = vsub.f32 1.5, %v581
          %v583 = vmul.f32 %v578, %v582
          %vm584 = vweird.f32 %v567
          %vm585 = vweird.f32 %v578
          %vm586 = vmor %vm584, %vm585
          %v587 = vsel %vm586, %v578, %v583
          %v588 = vmul.f32 %v556, %v577
          %v589 = vmul.f32 %v557, %v587
          %v590 = vperm.slane %v541, 0
          %v591 = vmul.f32 %v588, %v590
          %v592 = vmul.f32 %v589, %v590
          %v593 = vperm.slane %v542, 0
          %v594 = vadd.f32 %v591, %v593
          %v595 = vadd.f32 %v592, %v593
          %596 = vst [vmem:[#allocation2] sm:$0xff] %v594
          %597 = vst [vmem:[#allocation2 + $0x8] sm:$0xff] %v595
        $region80: #{roberta_forward.1} parent=59 // pred_fallthru
          _
        %v598 = vld [vmem:[#allocation2] sm:$0xff]
        %v599 = vld [vmem:[#allocation2 + $0x8] sm:$0xff]
        %v600 = vld [vmem:[%s475] sm:$0xff]
        %v601 = vld [vmem:[%s475 + $0x8] sm:$0xff]
        %v602 = vld [vmem:[%s475 + $0x10] sm:$0xff]
        %v603 = vld [vmem:[%s475 + $0x18] sm:$0xff]
        %v604 = vpack.c.bf16 %v599, %v598
        %v605 = vld [vmem:[%s445] sm:$0xff]
        %v606 = vld [vmem:[%s445 + $0x8] sm:$0xf]
        %v607 = vld [vmem:[%s445 + $0xc] sm:$0xff]
        %v608 = vld [vmem:[%s445 + $0x14] sm:$0xf]
        %v609 = vld [vmem:[%s445 + $0x18] sm:$0xff]
        %v610 = vld [vmem:[%s445 + $0x20] sm:$0xf]
        %v611 = vld [vmem:[%s445 + $0x24] sm:$0xff]
        %v612 = vld [vmem:[%s445 + $0x2c] sm:$0xf]
        %v613 = vld [vmem:[%s445 + $0x30] sm:$0xff]
        %v614 = vld [vmem:[%s445 + $0x38] sm:$0xf]
        %v615 = vld [vmem:[%s445 + $0x3c] sm:$0xff]
        %v616 = vld [vmem:[%s445 + $0x44] sm:$0xf]
        %v617 = vld [vmem:[%s445 + $0x48] sm:$0xff]
        %v618 = vld [vmem:[%s445 + $0x50] sm:$0xf]
        %v619 = vld [vmem:[%s445 + $0x54] sm:$0xff]
        %v620 = vld [vmem:[%s445 + $0x5c] sm:$0xf]
        %v621 = vld [vmem:[%s445 + $0x60] sm:$0xff]
        %v622 = vld [vmem:[%s445 + $0x68] sm:$0xf]
        %v623 = vld [vmem:[%s445 + $0x6c] sm:$0xff]
        %v624 = vld [vmem:[%s445 + $0x74] sm:$0xf]
        %v625 = vld [vmem:[%s445 + $0x78] sm:$0xff]
        %v626 = vld [vmem:[%s445 + $0x80] sm:$0xf]
        %v627 = vld [vmem:[%s445 + $0x84] sm:$0xff]
        %v628 = vld [vmem:[%s445 + $0x8c] sm:$0xf]
        %v629 = vld [vmem:[%s445 + $0x90] sm:$0xff]
        %v630 = vld [vmem:[%s445 + $0x98] sm:$0xf]
        %v631 = vld [vmem:[%s445 + $0x9c] sm:$0xff]
        %v632 = vld [vmem:[%s445 + $0xa4] sm:$0xf]
        %v633 = vld [vmem:[%s445 + $0xa8] sm:$0xff]
        %v634 = vld [vmem:[%s445 + $0xb0] sm:$0xf]
        %v635 = vld [vmem:[%s445 + $0xb4] sm:$0xff]
        %v636 = vld [vmem:[%s445 + $0xbc] sm:$0xf]
        %v669 = vunpack.c.l.b16 %v605
        %v670 = vunpack.c.h.b16 %v605
        %v671 = vunpack.c.l.b16 %v606
        %v672 = vunpack.c.l.b16 %v607
        %v673 = vunpack.c.h.b16 %v607
        %v674 = vunpack.c.l.b16 %v608
        %v675 = vunpack.c.l.b16 %v609
        %v676 = vunpack.c.h.b16 %v609
        %v677 = vunpack.c.l.b16 %v610
        %v678 = vunpack.c.l.b16 %v611
        %v679 = vunpack.c.h.b16 %v611
        %v680 = vunpack.c.l.b16 %v612
        %v681 = vunpack.c.l.b16 %v613
        %v682 = vunpack.c.h.b16 %v613
        %v683 = vunpack.c.l.b16 %v614
        %v684 = vunpack.c.l.b16 %v615
        %v685 = vunpack.c.h.b16 %v615
        %v686 = vunpack.c.l.b16 %v616
        %v687 = vunpack.c.l.b16 %v617
        %v688 = vunpack.c.h.b16 %v617
        %v689 = vunpack.c.l.b16 %v618
        %v690 = vunpack.c.l.b16 %v619
        %v691 = vunpack.c.h.b16 %v619
        %v692 = vunpack.c.l.b16 %v620
        %v693 = vunpack.c.l.b16 %v621
        %v694 = vunpack.c.h.b16 %v621
        %v695 = vunpack.c.l.b16 %v622
        %v696 = vunpack.c.l.b16 %v623
        %v697 = vunpack.c.h.b16 %v623
        %v698 = vunpack.c.l.b16 %v624
        %v699 = vunpack.c.l.b16 %v625
        %v700 = vunpack.c.h.b16 %v625
        %v701 = vunpack.c.l.b16 %v626
        %v702 = vunpack.c.l.b16 %v627
        %v703 = vunpack.c.h.b16 %v627
        %v704 = vunpack.c.l.b16 %v628
        %v705 = vunpack.c.l.b16 %v629
        %v706 = vunpack.c.h.b16 %v629
        %v707 = vunpack.c.l.b16 %v630
        %v708 = vunpack.c.l.b16 %v631
        %v709 = vunpack.c.h.b16 %v631
        %v710 = vunpack.c.l.b16 %v632
        %v711 = vunpack.c.l.b16 %v633
        %v712 = vunpack.c.h.b16 %v633
        %v713 = vunpack.c.l.b16 %v634
        %v714 = vunpack.c.l.b16 %v635
        %v715 = vunpack.c.h.b16 %v635
        %v716 = vunpack.c.l.b16 %v636
        %v717 = vpack.c.b16 %v672, %v669
        %v718 = vpack.c.b16 %v673, %v670
        %v719 = vpack.c.b16 %v674, %v671
        %v720 = vpack.c.b16 %v678, %v675
        %v721 = vpack.c.b16 %v679, %v676
        %v722 = vpack.c.b16 %v680, %v677
        %v723 = vpack.c.b16 %v684, %v681
        %v724 = vpack.c.b16 %v685, %v682
        %v725 = vpack.c.b16 %v686, %v683
        %v726 = vpack.c.b16 %v690, %v687
        %v727 = vpack.c.b16 %v691, %v688
        %v728 = vpack.c.b16 %v692, %v689
        %v729 = vpack.c.b16 %v696, %v693
        %v730 = vpack.c.b16 %v697, %v694
        %v731 = vpack.c.b16 %v698, %v695
        %v732 = vpack.c.b16 %v702, %v699
        %v733 = vpack.c.b16 %v703, %v700
        %v734 = vpack.c.b16 %v704, %v701
        %v735 = vpack.c.b16 %v708, %v705
        %v736 = vpack.c.b16 %v709, %v706
        %v737 = vpack.c.b16 %v710, %v707
        %v738 = vpack.c.b16 %v714, %v711
        %v739 = vpack.c.b16 %v715, %v712
        %v740 = vpack.c.b16 %v716, %v713
        %765 = vmatpush.bf16.msra.mxu0 %v738
        %766 = vmatpush.bf16.msra.mxu0 %v735
        %767 = vmatpush.bf16.msra.mxu0 %v732
        %768 = vmatpush.bf16.msra.mxu0 %v729
        %769 = vmatpush.bf16.msra.mxu0 %v726
        %770 = vmatpush.bf16.msra.mxu0 %v723
        %771 = vmatpush.bf16.msra.mxu0 %v720
        %772 = vmatpush.bf16.msra.mxu0 %v717
        %773 = vmatmul.bf16.gmra.mxu0 %v604
        %v774 = vpop.f32.mrf.mxu0
        %v775 = vadd.f32 0.0, %v774
        %v776 = vpop.f32.mrf.mxu0
        %v777 = vadd.f32 0.0, %v776
        %778 = vdwg.mxu0
        %779 = vmatpush.bf16.msra.mxu0 %v739
        %780 = vmatpush.bf16.msra.mxu0 %v736
        %781 = vmatpush.bf16.msra.mxu0 %v733
        %782 = vmatpush.bf16.msra.mxu0 %v730
        %783 = vmatpush.bf16.msra.mxu0 %v727
        %784 = vmatpush.bf16.msra.mxu0 %v724
        %785 = vmatpush.bf16.msra.mxu0 %v721
        %786 = vmatpush.bf16.msra.mxu0 %v718
        %787 = vmatmul.bf16.gmra.mxu0 %v604
        %v788 = vpop.f32.mrf.mxu0
        %v789 = vadd.f32 0.0, %v788
        %v790 = vpop.f32.mrf.mxu0
        %v791 = vadd.f32 0.0, %v790
        %792 = vdwg.mxu0
        %793 = vmatpush.bf16.msra.mxu0 %v740
        %794 = vmatpush.bf16.msra.mxu0 %v737
        %795 = vmatpush.bf16.msra.mxu0 %v734
        %796 = vmatpush.bf16.msra.mxu0 %v731
        %797 = vmatpush.bf16.msra.mxu0 %v728
        %798 = vmatpush.bf16.msra.mxu0 %v725
        %799 = vmatpush.bf16.msra.mxu0 %v722
        %800 = vmatpush.bf16.msra.mxu0 %v719
        %801 = vmatmul.bf16.gmra.mxu0 %v604
        %v802 = vpop.f32.mrf.mxu0
        %v803 = vadd.f32 0.0, %v802
        %v804 = vpop.f32.mrf.mxu0
        %v805 = vadd.f32 0.0, %v804
        %806 = vdwg.mxu0
        %v807 = vperm.slane %v600, 1
        %v808 = vadd.f32 %v775, %v807
        %v809 = vadd.f32 %v777, %v807
        %v810 = vperm.slane %v601, 1
        %v811 = vadd.f32 %v789, %v810
        %v812 = vadd.f32 %v791, %v810
        %v813 = vperm.slane %v602, 1
        %v814 = vadd.f32 %v803, %v813
        %v815 = vadd.f32 %v805, %v813
        %v816 = vld [vmem:[%s1] sm:$0xff]
        %v817 = vld [vmem:[%s1 + $0x8] sm:$0xff]
        %vm818 = vcmask 523264
        %v820 = vsel %vm818, %v808, 0
        %v823 = vsel %vm818, %v809, 0
        %v826 = vsel %vm818, %v811, 0
        %v829 = vsel %vm818, %v812, 0
        %831 = vmatpush.xpose.msra.mxu0 0.0
        %832 = vmatpush.xpose.msra.mxu0 0.0
        %833 = vmatpush.xpose.msra.mxu0 0.0
        %834 = vmatpush.xpose.msra.mxu0 0.0
        %835 = vmatpush.xpose.msra.mxu0 0.0
        %836 = vmatpush.xpose.msra.mxu0 0.0
        %837 = vmatpush.xpose.msra.mxu0 0.0
        %838 = vmatpush.xpose.msra.mxu0 0.0
        %839 = vmatpush.xpose.msra.mxu0 0.0
        %840 = vmatpush.xpose.msra.mxu0 0.0
        %841 = vmatpush.xpose.msra.mxu0 0.0
        %842 = vmatpush.xpose.msra.mxu0 0.0
        %843 = vmatpush.xpose.msra.mxu0 0.0
        %844 = vmatpush.xpose.msra.mxu0 0.0
        %845 = vmatpush.xpose.msra.mxu0 %v829
        %846 = vmatpush.xpose.msra.mxu0 %v826
        %847 = vmatmul.f32.gmra.mxu0 %v820
        %v848 = vpop.f32.mrf.mxu0
        %v849 = vadd.f32 0.0, %v848
        %850 = vmatmul.f32.gmra.mxu0 %v823
        %v851 = vpop.f32.mrf.mxu0
        %v852 = vadd.f32 0.0, %v851
        %853 = vdwg.mxu0
        %v854 = vmul.f32 %v849, 0.125
        %v855 = vmul.f32 %v852, 0.125
        %v856 = vadd.f32 %v854, %v816
        %v857 = vadd.f32 %v855, %v817
        %vm858 = vcmask 130048
        %v859 = vsel %vm858, %v856, -inf
        %860 = vmax.xlane.f32.xlu0 %v859
        %v861 = vpop.xlane.xlu0 %860
        %v862 = vsel %vm858, %v857, -inf
        %863 = vmax.xlane.f32.xlu0 %v862
        %v864 = vpop.xlane.xlu0 %863
        %v865 = vsub.f32 %v856, %v861
        %v866 = vsub.f32 %v857, %v864
        %v867 = vmul.f32 %v865, 1.442695
        %v868 = vpow.pop %v867
        %v869 = vmul.f32 %v866, 1.442695
        %v870 = vpow.pop %v869
        %v871 = vsel %vm858, %v868, 0.0
        %872 = vadd.xlane.f32.xlu0 %v871
        %v873 = vpop.xlane.xlu0 %872
        %v874 = vsel %vm858, %v870, 0.0
        %875 = vadd.xlane.f32.xlu0 %v874
        %v876 = vpop.xlane.xlu0 %875
        %v877 = vrcp.pop %v873
        %v878 = vrcp.pop %v876
        %v879 = vmul.f32 %v868, %v877
        %v880 = vmul.f32 %v870, %v878
        %v882 = vsel %vm858, %v879, 0
        %v885 = vsel %vm858, %v880, 0
        %887 = vmatpush.msra.mxu0 0.0
        %888 = vmatpush.msra.mxu0 0.0
        %889 = vmatpush.msra.mxu0 0.0
        %890 = vmatpush.msra.mxu0 0.0
        %891 = vmatpush.msra.mxu0 0.0
        %892 = vmatpush.msra.mxu0 0.0
        %893 = vmatpush.msra.mxu0 0.0
        %894 = vmatpush.msra.mxu0 0.0
        %895 = vmatpush.msra.mxu0 0.0
        %896 = vmatpush.msra.mxu0 0.0
        %897 = vmatpush.msra.mxu0 0.0
        %898 = vmatpush.msra.mxu0 0.0
        %899 = vmatpush.msra.mxu0 0.0
        %900 = vmatpush.msra.mxu0 0.0
        %901 = vmatpush.msra.mxu0 %v815
        %902 = vmatpush.msra.mxu0 %v814
        %903 = vmatmul.f32.gmra.mxu0 %v882
        %v904 = vpop.f32.mrf.mxu0
        %v905 = vadd.f32 0.0, %v904
        %906 = vmatmul.f32.gmra.mxu0 %v885
        %v907 = vpop.f32.mrf.mxu0
        %v908 = vadd.f32 0.0, %v907
        %909 = vdwg.mxu0
        %910 = vrot.lane.b32.xlu0 %v808, 64
        %v911 = vpop.permute.xlu0 %910
        %912 = vrot.lane.b32.xlu0 %v809, 64
        %v913 = vpop.permute.xlu0 %912
        %914 = vrot.lane.b32.xlu0 %v811, 64
        %v915 = vpop.permute.xlu0 %914
        %916 = vrot.lane.b32.xlu0 %v812, 64
        %v917 = vpop.permute.xlu0 %916
        %v918 = vsel %vm818, %v911, 0
        %v920 = vsel %vm818, %v913, 0
        %v922 = vsel %vm818, %v915, 0
        %v924 = vsel %vm818, %v917, 0
        %926 = vmatpush.xpose.msra.mxu0 0.0
        %927 = vmatpush.xpose.msra.mxu0 0.0
        %928 = vmatpush.xpose.msra.mxu0 0.0
        %929 = vmatpush.xpose.msra.mxu0 0.0
        %930 = vmatpush.xpose.msra.mxu0 0.0
        %931 = vmatpush.xpose.msra.mxu0 0.0
        %932 = vmatpush.xpose.msra.mxu0 0.0
        %933 = vmatpush.xpose.msra.mxu0 0.0
        %934 = vmatpush.xpose.msra.mxu0 0.0
        %935 = vmatpush.xpose.msra.mxu0 0.0
        %936 = vmatpush.xpose.msra.mxu0 0.0
        %937 = vmatpush.xpose.msra.mxu0 0.0
        %938 = vmatpush.xpose.msra.mxu0 0.0
        %939 = vmatpush.xpose.msra.mxu0 0.0
        %940 = vmatpush.xpose.msra.mxu0 %v924
        %941 = vmatpush.xpose.msra.mxu0 %v922
        %942 = vmatmul.f32.gmra.mxu0 %v918
        %v943 = vpop.f32.mrf.mxu0
        %v944 = vadd.f32 0.0, %v943
        %945 = vmatmul.f32.gmra.mxu0 %v920
        %v946 = vpop.f32.mrf.mxu0
        %v947 = vadd.f32 0.0, %v946
        %948 = vdwg.mxu0
        %v949 = vmul.f32 %v944, 0.125
        %v950 = vmul.f32 %v947, 0.125
        %v951 = vadd.f32 %v949, %v816
        %v952 = vadd.f32 %v950, %v817
        %v953 = vsel %vm858, %v951, -inf
        %954 = vmax.xlane.f32.xlu0 %v953
        %v955 = vpop.xlane.xlu0 %954
        %v956 = vsel %vm858, %v952, -inf
        %957 = vmax.xlane.f32.xlu0 %v956
        %v958 = vpop.xlane.xlu0 %957
        %v959 = vsub.f32 %v951, %v955
        %v960 = vsub.f32 %v952, %v958
        %v961 = vmul.f32 %v959, 1.442695
        %v962 = vpow.pop %v961
        %v963 = vmul.f32 %v960, 1.442695
        %v964 = vpow.pop %v963
        %v965 = vsel %vm858, %v962, 0.0
        %966 = vadd.xlane.f32.xlu0 %v965
        %v967 = vpop.xlane.xlu0 %966
        %v968 = vsel %vm858, %v964, 0.0
        %969 = vadd.xlane.f32.xlu0 %v968
        %v970 = vpop.xlane.xlu0 %969
        %v971 = vrcp.pop %v967
        %v972 = vrcp.pop %v970
        %v973 = vmul.f32 %v962, %v971
        %v974 = vmul.f32 %v964, %v972
        %977 = vrot.lane.b32.xlu0 %v814, 64
        %v978 = vpop.permute.xlu0 %977
        %979 = vrot.lane.b32.xlu0 %v815, 64
        %v980 = vpop.permute.xlu0 %979
        %v984 = vsel %vm858, %v973, 0
        %v987 = vsel %vm858, %v974, 0
        %989 = vmatpush.msra.mxu0 0.0
        %990 = vmatpush.msra.mxu0 0.0
        %991 = vmatpush.msra.mxu0 0.0
        %992 = vmatpush.msra.mxu0 0.0
        %993 = vmatpush.msra.mxu0 0.0
        %994 = vmatpush.msra.mxu0 0.0
        %995 = vmatpush.msra.mxu0 0.0
        %996 = vmatpush.msra.mxu0 0.0
        %997 = vmatpush.msra.mxu0 0.0
        %998 = vmatpush.msra.mxu0 0.0
        %999 = vmatpush.msra.mxu0 0.0
        %1000 = vmatpush.msra.mxu0 0.0
        %1001 = vmatpush.msra.mxu0 0.0
        %1002 = vmatpush.msra.mxu0 0.0
        %1003 = vmatpush.msra.mxu0 %v980
        %1004 = vmatpush.msra.mxu0 %v978
        %1005 = vmatmul.f32.gmra.mxu0 %v984
        %v1006 = vpop.f32.mrf.mxu0
        %v1007 = vadd.f32 0.0, %v1006
        %1008 = vmatmul.f32.gmra.mxu0 %v987
        %v1009 = vpop.f32.mrf.mxu0
        %v1010 = vadd.f32 0.0, %v1009
        %1011 = vdwg.mxu0
        %1014 = vrot.lane.b32.xlu0 %v1007, 64
        %v1015 = vpop.permute.xlu0 %1014
        %1016 = vrot.lane.b32.xlu0 %v1010, 64
        %v1017 = vpop.permute.xlu0 %1016
        %v1020 = vsel %vm818, %v905, %v1015
        %v1021 = vsel %vm818, %v908, %v1017
        %v1022 = vpack.c.bf16 %v1021, %v1020
        %v1023 = vld [vmem:[%s534] sm:$0xf]
        %v1024 = vld [vmem:[%s534 + $0x4] sm:$0xf]
        %v1025 = vld [vmem:[%s534 + $0x8] sm:$0xf]
        %v1026 = vld [vmem:[%s534 + $0xc] sm:$0xf]
        %v1027 = vld [vmem:[%s534 + $0x10] sm:$0xf]
        %v1028 = vld [vmem:[%s534 + $0x14] sm:$0xf]
        %v1029 = vld [vmem:[%s534 + $0x18] sm:$0xf]
        %v1030 = vld [vmem:[%s534 + $0x1c] sm:$0xf]
        %v1031 = vld [vmem:[%s534 + $0x20] sm:$0xf]
        %v1032 = vld [vmem:[%s534 + $0x24] sm:$0xf]
        %v1033 = vld [vmem:[%s534 + $0x28] sm:$0xf]
        %v1034 = vld [vmem:[%s534 + $0x2c] sm:$0xf]
        %v1035 = vld [vmem:[%s534 + $0x30] sm:$0xf]
        %v1036 = vld [vmem:[%s534 + $0x34] sm:$0xf]
        %v1037 = vld [vmem:[%s534 + $0x38] sm:$0xf]
        %v1038 = vld [vmem:[%s534 + $0x3c] sm:$0xf]
        %v1039 = vperm.slane %v600, 2
        %v1056 = vunpack.c.l.b16 %v1023
        %v1057 = vunpack.c.l.b16 %v1024
        %v1058 = vunpack.c.l.b16 %v1025
        %v1059 = vunpack.c.l.b16 %v1026
        %v1060 = vunpack.c.l.b16 %v1027
        %v1061 = vunpack.c.l.b16 %v1028
        %v1062 = vunpack.c.l.b16 %v1029
        %v1063 = vunpack.c.l.b16 %v1030
        %v1064 = vunpack.c.l.b16 %v1031
        %v1065 = vunpack.c.l.b16 %v1032
        %v1066 = vunpack.c.l.b16 %v1033
        %v1067 = vunpack.c.l.b16 %v1034
        %v1068 = vunpack.c.l.b16 %v1035
        %v1069 = vunpack.c.l.b16 %v1036
        %v1070 = vunpack.c.l.b16 %v1037
        %v1071 = vunpack.c.l.b16 %v1038
        %v1072 = vpack.c.b16 %v1057, %v1056
        %v1073 = vpack.c.b16 %v1059, %v1058
        %v1074 = vpack.c.b16 %v1061, %v1060
        %v1075 = vpack.c.b16 %v1063, %v1062
        %v1076 = vpack.c.b16 %v1065, %v1064
        %v1077 = vpack.c.b16 %v1067, %v1066
        %v1078 = vpack.c.b16 %v1069, %v1068
        %v1079 = vpack.c.b16 %v1071, %v1070
        %1088 = vmatpush.bf16.msra.mxu0 %v1079
        %1089 = vmatpush.bf16.msra.mxu0 %v1078
        %1090 = vmatpush.bf16.msra.mxu0 %v1077
        %1091 = vmatpush.bf16.msra.mxu0 %v1076
        %1092 = vmatpush.bf16.msra.mxu0 %v1075
        %1093 = vmatpush.bf16.msra.mxu0 %v1074
        %1094 = vmatpush.bf16.msra.mxu0 %v1073
        %1095 = vmatpush.bf16.msra.mxu0 %v1072
        %1096 = vmatmul.bf16.gmra.mxu0 %v1022
        %v1097 = vpop.f32.mrf.mxu0
        %v1098 = vadd.f32 %v1039, %v1097
        %v1099 = vpop.f32.mrf.mxu0
        %v1100 = vadd.f32 %v1039, %v1099
        %1101 = vdwg.mxu0
        %v1102 = vadd.f32 %v1098, %v598
        %v1103 = vadd.f32 %v1100, %v599
        %1104 = vadd.xlane.f32.xlu0 %v1102
        %v1105 = vpop.xlane.xlu0 %1104
        %1106 = vadd.xlane.f32.xlu0 %v1103
        %v1107 = vpop.xlane.xlu0 %1106
        %v1108 = vrcp.pop 128.0
        %v1109 = vmul.f32 128.0, %v1108
        %v1110 = vsub.f32 1.0, %v1109
        %v1111 = vmul.f32 %v1108, %v1110
        %v1112 = vadd.f32 %v1108, %v1111
        %vm1113 = vweird.f32 %v1108
        %v1114 = vsel %vm1113, %v1108, %v1112
        %v1115 = vmul.f32 %v1105, %v1114
        %v1116 = vmul.f32 %v1107, %v1114
        %v1117 = vsub.f32 %v1102, %v1115
        %v1118 = vsub.f32 %v1103, %v1116
        %v1119 = vmul.f32 %v1117, %v1117
        %v1120 = vmul.f32 %v1118, %v1118
        %1121 = vadd.xlane.f32.xlu0 %v1119
        %v1122 = vpop.xlane.xlu0 %1121
        %1123 = vadd.xlane.f32.xlu0 %v1120
        %v1124 = vpop.xlane.xlu0 %1123
        %v1125 = vmul.f32 %v1122, %v1114
        %v1126 = vmul.f32 %v1124, %v1114
        %v1127 = vadd.f32 %v1125, 1e-12
        %v1128 = vadd.f32 %v1126, 1e-12
        %v1129 = vrsqrt.pop %v1127
        %v1130 = vmul.f32 %v1129, %v1127
        %v1131 = vmul.f32 %v1130, %v1129
        %v1132 = vmul.f32 0.5, %v1131
        %v1133 = vsub.f32 1.5, %v1132
        %v1134 = vmul.f32 %v1129, %v1133
        %vm1135 = vweird.f32 %v1127
        %vm1136 = vweird.f32 %v1129
        %vm1137 = vmor %vm1135, %vm1136
        %v1138 = vsel %vm1137, %v1129, %v1134
        %v1139 = vrsqrt.pop %v1128
        %v1140 = vmul.f32 %v1139, %v1128
        %v1141 = vmul.f32 %v1140, %v1139
        %v1142 = vmul.f32 0.5, %v1141
        %v1143 = vsub.f32 1.5, %v1142
        %v1144 = vmul.f32 %v1139, %v1143
        %vm1145 = vweird.f32 %v1128
        %vm1146 = vweird.f32 %v1139
        %vm1147 = vmor %vm1145, %vm1146
        %v1148 = vsel %vm1147, %v1139, %v1144
        %v1149 = vmul.f32 %v1117, %v1138
        %v1150 = vmul.f32 %v1118, %v1148
        %v1151 = vperm.slane %v602, 2
        %v1152 = vmul.f32 %v1149, %v1151
        %v1153 = vmul.f32 %v1150, %v1151
        %v1154 = vperm.slane %v603, 2
        %v1155 = vadd.f32 %v1152, %v1154
        %v1156 = vadd.f32 %v1153, %v1154
        %v1157 = vpack.c.bf16 %v1156, %v1155
        %v1158 = vld [vmem:[%s455] sm:$0xff]
        %v1159 = vld [vmem:[%s455 + $0x8] sm:$0xff]
        %v1160 = vld [vmem:[%s455 + $0x10] sm:$0xff]
        %v1161 = vld [vmem:[%s455 + $0x18] sm:$0xff]
        %v1162 = vld [vmem:[%s455 + $0x20] sm:$0xff]
        %v1163 = vld [vmem:[%s455 + $0x28] sm:$0xff]
        %v1164 = vld [vmem:[%s455 + $0x30] sm:$0xff]
        %v1165 = vld [vmem:[%s455 + $0x38] sm:$0xff]
        %v1166 = vld [vmem:[%s455 + $0x40] sm:$0xff]
        %v1167 = vld [vmem:[%s455 + $0x48] sm:$0xff]
        %v1168 = vld [vmem:[%s455 + $0x50] sm:$0xff]
        %v1169 = vld [vmem:[%s455 + $0x58] sm:$0xff]
        %v1170 = vld [vmem:[%s455 + $0x60] sm:$0xff]
        %v1171 = vld [vmem:[%s455 + $0x68] sm:$0xff]
        %v1172 = vld [vmem:[%s455 + $0x70] sm:$0xff]
        %v1173 = vld [vmem:[%s455 + $0x78] sm:$0xff]
        %v1174 = vld [vmem:[%s455 + $0x80] sm:$0xff]
        %v1175 = vld [vmem:[%s455 + $0x88] sm:$0xff]
        %v1176 = vld [vmem:[%s455 + $0x90] sm:$0xff]
        %v1177 = vld [vmem:[%s455 + $0x98] sm:$0xff]
        %v1178 = vld [vmem:[%s455 + $0xa0] sm:$0xff]
        %v1179 = vld [vmem:[%s455 + $0xa8] sm:$0xff]
        %v1180 = vld [vmem:[%s455 + $0xb0] sm:$0xff]
        %v1181 = vld [vmem:[%s455 + $0xb8] sm:$0xff]
        %v1182 = vld [vmem:[%s455 + $0xc0] sm:$0xff]
        %v1183 = vld [vmem:[%s455 + $0xc8] sm:$0xff]
        %v1184 = vld [vmem:[%s455 + $0xd0] sm:$0xff]
        %v1185 = vld [vmem:[%s455 + $0xd8] sm:$0xff]
        %v1186 = vld [vmem:[%s455 + $0xe0] sm:$0xff]
        %v1187 = vld [vmem:[%s455 + $0xe8] sm:$0xff]
        %v1188 = vld [vmem:[%s455 + $0xf0] sm:$0xff]
        %v1189 = vld [vmem:[%s455 + $0xf8] sm:$0xff]
        %v1190 = vperm.slane %v600, 0
        %v1191 = vperm.slane %v601, 0
        %v1192 = vperm.slane %v602, 0
        %v1193 = vperm.slane %v603, 0
        %v1226 = vunpack.c.l.b16 %v1158
        %v1227 = vunpack.c.h.b16 %v1158
        %v1228 = vunpack.c.l.b16 %v1159
        %v1229 = vunpack.c.h.b16 %v1159
        %v1230 = vunpack.c.l.b16 %v1160
        %v1231 = vunpack.c.h.b16 %v1160
        %v1232 = vunpack.c.l.b16 %v1161
        %v1233 = vunpack.c.h.b16 %v1161
        %v1234 = vunpack.c.l.b16 %v1162
        %v1235 = vunpack.c.h.b16 %v1162
        %v1236 = vunpack.c.l.b16 %v1163
        %v1237 = vunpack.c.h.b16 %v1163
        %v1238 = vunpack.c.l.b16 %v1164
        %v1239 = vunpack.c.h.b16 %v1164
        %v1240 = vunpack.c.l.b16 %v1165
        %v1241 = vunpack.c.h.b16 %v1165
        %v1242 = vunpack.c.l.b16 %v1166
        %v1243 = vunpack.c.h.b16 %v1166
        %v1244 = vunpack.c.l.b16 %v1167
        %v1245 = vunpack.c.h.b16 %v1167
        %v1246 = vunpack.c.l.b16 %v1168
        %v1247 = vunpack.c.h.b16 %v1168
        %v1248 = vunpack.c.l.b16 %v1169
        %v1249 = vunpack.c.h.b16 %v1169
        %v1250 = vunpack.c.l.b16 %v1170
        %v1251 = vunpack.c.h.b16 %v1170
        %v1252 = vunpack.c.l.b16 %v1171
        %v1253 = vunpack.c.h.b16 %v1171
        %v1254 = vunpack.c.l.b16 %v1172
        %v1255 = vunpack.c.h.b16 %v1172
        %v1256 = vunpack.c.l.b16 %v1173
        %v1257 = vunpack.c.h.b16 %v1173
        %v1258 = vunpack.c.l.b16 %v1174
        %v1259 = vunpack.c.h.b16 %v1174
        %v1260 = vunpack.c.l.b16 %v1175
        %v1261 = vunpack.c.h.b16 %v1175
        %v1262 = vunpack.c.l.b16 %v1176
        %v1263 = vunpack.c.h.b16 %v1176
        %v1264 = vunpack.c.l.b16 %v1177
        %v1265 = vunpack.c.h.b16 %v1177
        %v1266 = vunpack.c.l.b16 %v1178
        %v1267 = vunpack.c.h.b16 %v1178
        %v1268 = vunpack.c.l.b16 %v1179
        %v1269 = vunpack.c.h.b16 %v1179
        %v1270 = vunpack.c.l.b16 %v1180
        %v1271 = vunpack.c.h.b16 %v1180
        %v1272 = vunpack.c.l.b16 %v1181
        %v1273 = vunpack.c.h.b16 %v1181
        %v1274 = vunpack.c.l.b16 %v1182
        %v1275 = vunpack.c.h.b16 %v1182
        %v1276 = vunpack.c.l.b16 %v1183
        %v1277 = vunpack.c.h.b16 %v1183
        %v1278 = vunpack.c.l.b16 %v1184
        %v1279 = vunpack.c.h.b16 %v1184
        %v1280 = vunpack.c.l.b16 %v1185
        %v1281 = vunpack.c.h.b16 %v1185
        %v1282 = vunpack.c.l.b16 %v1186
        %v1283 = vunpack.c.h.b16 %v1186
        %v1284 = vunpack.c.l.b16 %v1187
        %v1285 = vunpack.c.h.b16 %v1187
        %v1286 = vunpack.c.l.b16 %v1188
        %v1287 = vunpack.c.h.b16 %v1188
        %v1288 = vunpack.c.l.b16 %v1189
        %v1289 = vunpack.c.h.b16 %v1189
        %v1290 = vpack.c.b16 %v1230, %v1226
        %v1291 = vpack.c.b16 %v1231, %v1227
        %v1292 = vpack.c.b16 %v1232, %v1228
        %v1293 = vpack.c.b16 %v1233, %v1229
        %v1294 = vpack.c.b16 %v1238, %v1234
        %v1295 = vpack.c.b16 %v1239, %v1235
        %v1296 = vpack.c.b16 %v1240, %v1236
        %v1297 = vpack.c.b16 %v1241, %v1237
        %v1298 = vpack.c.b16 %v1246, %v1242
        %v1299 = vpack.c.b16 %v1247, %v1243
        %v1300 = vpack.c.b16 %v1248, %v1244
        %v1301 = vpack.c.b16 %v1249, %v1245
        %v1302 = vpack.c.b16 %v1254, %v1250
        %v1303 = vpack.c.b16 %v1255, %v1251
        %v1304 = vpack.c.b16 %v1256, %v1252
        %v1305 = vpack.c.b16 %v1257, %v1253
        %v1306 = vpack.c.b16 %v1262, %v1258
        %v1307 = vpack.c.b16 %v1263, %v1259
        %v1308 = vpack.c.b16 %v1264, %v1260
        %v1309 = vpack.c.b16 %v1265, %v1261
        %v1310 = vpack.c.b16 %v1270, %v1266
        %v1311 = vpack.c.b16 %v1271, %v1267
        %v1312 = vpack.c.b16 %v1272, %v1268
        %v1313 = vpack.c.b16 %v1273, %v1269
        %v1314 = vpack.c.b16 %v1278, %v1274
        %v1315 = vpack.c.b16 %v1279, %v1275
        %v1316 = vpack.c.b16 %v1280, %v1276
        %v1317 = vpack.c.b16 %v1281, %v1277
        %v1318 = vpack.c.b16 %v1286, %v1282
        %v1319 = vpack.c.b16 %v1287, %v1283
        %v1320 = vpack.c.b16 %v1288, %v1284
        %v1321 = vpack.c.b16 %v1289, %v1285
        %1354 = vmatpush.bf16.msra.mxu0 %v1318
        %1355 = vmatpush.bf16.msra.mxu0 %v1314
        %1356 = vmatpush.bf16.msra.mxu0 %v1310
        %1357 = vmatpush.bf16.msra.mxu0 %v1306
        %1358 = vmatpush.bf16.msra.mxu0 %v1302
        %1359 = vmatpush.bf16.msra.mxu0 %v1298
        %1360 = vmatpush.bf16.msra.mxu0 %v1294
        %1361 = vmatpush.bf16.msra.mxu0 %v1290
        %1362 = vmatmul.bf16.gmra.mxu0 %v1157
        %v1363 = vpop.f32.mrf.mxu0
        %v1364 = vadd.f32 %v1190, %v1363
        %v1365 = vpop.f32.mrf.mxu0
        %v1366 = vadd.f32 %v1190, %v1365
        %1367 = vdwg.mxu0
        %1368 = vmatpush.bf16.msra.mxu0 %v1319
        %1369 = vmatpush.bf16.msra.mxu0 %v1315
        %1370 = vmatpush.bf16.msra.mxu0 %v1311
        %1371 = vmatpush.bf16.msra.mxu0 %v1307
        %1372 = vmatpush.bf16.msra.mxu0 %v1303
        %1373 = vmatpush.bf16.msra.mxu0 %v1299
        %1374 = vmatpush.bf16.msra.mxu0 %v1295
        %1375 = vmatpush.bf16.msra.mxu0 %v1291
        %1376 = vmatmul.bf16.gmra.mxu0 %v1157
        %v1377 = vpop.f32.mrf.mxu0
        %v1378 = vadd.f32 %v1191, %v1377
        %v1379 = vpop.f32.mrf.mxu0
        %v1380 = vadd.f32 %v1191, %v1379
        %1381 = vdwg.mxu0
        %1382 = vmatpush.bf16.msra.mxu0 %v1320
        %1383 = vmatpush.bf16.msra.mxu0 %v1316
        %1384 = vmatpush.bf16.msra.mxu0 %v1312
        %1385 = vmatpush.bf16.msra.mxu0 %v1308
        %1386 = vmatpush.bf16.msra.mxu0 %v1304
        %1387 = vmatpush.bf16.msra.mxu0 %v1300
        %1388 = vmatpush.bf16.msra.mxu0 %v1296
        %1389 = vmatpush.bf16.msra.mxu0 %v1292
        %1390 = vmatmul.bf16.gmra.mxu0 %v1157
        %v1391 = vpop.f32.mrf.mxu0
        %v1392 = vadd.f32 %v1192, %v1391
        %v1393 = vpop.f32.mrf.mxu0
        %v1394 = vadd.f32 %v1192, %v1393
        %1395 = vdwg.mxu0
        %1396 = vmatpush.bf16.msra.mxu0 %v1321
        %1397 = vmatpush.bf16.msra.mxu0 %v1317
        %1398 = vmatpush.bf16.msra.mxu0 %v1313
        %1399 = vmatpush.bf16.msra.mxu0 %v1309
        %1400 = vmatpush.bf16.msra.mxu0 %v1305
        %1401 = vmatpush.bf16.msra.mxu0 %v1301
        %1402 = vmatpush.bf16.msra.mxu0 %v1297
        %1403 = vmatpush.bf16.msra.mxu0 %v1293
        %1404 = vmatmul.bf16.gmra.mxu0 %v1157
        %v1405 = vpop.f32.mrf.mxu0
        %v1406 = vadd.f32 %v1193, %v1405
        %v1407 = vpop.f32.mrf.mxu0
        %v1408 = vadd.f32 %v1193, %v1407
        %1409 = vdwg.mxu0
        %v1410 = vmul.f32 %v1364, %v1364
        %v1411 = vmul.f32 %v1378, %v1378
        %v1412 = vmul.f32 %v1392, %v1392
        %v1413 = vmul.f32 %v1406, %v1406
        %v1414 = vmul.f32 %v1366, %v1366
        %v1415 = vmul.f32 %v1380, %v1380
        %v1416 = vmul.f32 %v1394, %v1394
        %v1417 = vmul.f32 %v1408, %v1408
        %v1418 = vmul.f32 %v1364, %v1410
        %v1419 = vmul.f32 %v1378, %v1411
        %v1420 = vmul.f32 %v1392, %v1412
        %v1421 = vmul.f32 %v1406, %v1413
        %v1422 = vmul.f32 %v1366, %v1414
        %v1423 = vmul.f32 %v1380, %v1415
        %v1424 = vmul.f32 %v1394, %v1416
        %v1425 = vmul.f32 %v1408, %v1417
        %v1426 = vmul.f32 %v1418, 0.044715
        %v1427 = vmul.f32 %v1419, 0.044715
        %v1428 = vmul.f32 %v1420, 0.044715
        %v1429 = vmul.f32 %v1421, 0.044715
        %v1430 = vmul.f32 %v1422, 0.044715
        %v1431 = vmul.f32 %v1423, 0.044715
        %v1432 = vmul.f32 %v1424, 0.044715
        %v1433 = vmul.f32 %v1425, 0.044715
        %v1434 = vadd.f32 %v1364, %v1426
        %v1435 = vadd.f32 %v1378, %v1427
        %v1436 = vadd.f32 %v1392, %v1428
        %v1437 = vadd.f32 %v1406, %v1429
        %v1438 = vadd.f32 %v1366, %v1430
        %v1439 = vadd.f32 %v1380, %v1431
        %v1440 = vadd.f32 %v1394, %v1432
        %v1441 = vadd.f32 %v1408, %v1433
        %v1442 = vmul.f32 %v1434, 0.7978846
        %v1443 = vmul.f32 %v1435, 0.7978846
        %v1444 = vmul.f32 %v1436, 0.7978846
        %v1445 = vmul.f32 %v1437, 0.7978846
        %v1446 = vmul.f32 %v1438, 0.7978846
        %v1447 = vmul.f32 %v1439, 0.7978846
        %v1448 = vmul.f32 %v1440, 0.7978846
        %v1449 = vmul.f32 %v1441, 0.7978846
        %v1450 = vtanh.pop %v1442
        %v1451 = vtanh.pop %v1443
        %v1452 = vtanh.pop %v1444
        %v1453 = vtanh.pop %v1445
        %v1454 = vtanh.pop %v1446
        %v1455 = vtanh.pop %v1447
        %v1456 = vtanh.pop %v1448
        %v1457 = vtanh.pop %v1449
        %v1458 = vadd.f32 %v1450, 1.0
        %v1459 = vadd.f32 %v1451, 1.0
        %v1460 = vadd.f32 %v1452, 1.0
        %v1461 = vadd.f32 %v1453, 1.0
        %v1462 = vadd.f32 %v1454, 1.0
        %v1463 = vadd.f32 %v1455, 1.0
        %v1464 = vadd.f32 %v1456, 1.0
        %v1465 = vadd.f32 %v1457, 1.0
        %v1466 = vmul.f32 %v1458, 0.5
        %v1467 = vmul.f32 %v1459, 0.5
        %v1468 = vmul.f32 %v1460, 0.5
        %v1469 = vmul.f32 %v1461, 0.5
        %v1470 = vmul.f32 %v1462, 0.5
        %v1471 = vmul.f32 %v1463, 0.5
        %v1472 = vmul.f32 %v1464, 0.5
        %v1473 = vmul.f32 %v1465, 0.5
        %v1474 = vmul.f32 %v1364, %v1466
        %v1475 = vmul.f32 %v1378, %v1467
        %v1476 = vmul.f32 %v1392, %v1468
        %v1477 = vmul.f32 %v1406, %v1469
        %v1478 = vmul.f32 %v1366, %v1470
        %v1479 = vmul.f32 %v1380, %v1471
        %v1480 = vmul.f32 %v1394, %v1472
        %v1481 = vmul.f32 %v1408, %v1473
        %v1482 = vpack.c.bf16 %v1478, %v1474
        %v1483 = vpack.c.bf16 %v1479, %v1475
        %v1484 = vpack.c.bf16 %v1480, %v1476
        %v1485 = vpack.c.bf16 %v1481, %v1477
        %v1486 = vld [vmem:[%s465] sm:$0xf]
        %v1487 = vld [vmem:[%s465 + $0x4] sm:$0xf]
        %v1488 = vld [vmem:[%s465 + $0x8] sm:$0xf]
        %v1489 = vld [vmem:[%s465 + $0xc] sm:$0xf]
        %v1490 = vld [vmem:[%s465 + $0x10] sm:$0xf]
        %v1491 = vld [vmem:[%s465 + $0x14] sm:$0xf]
        %v1492 = vld [vmem:[%s465 + $0x18] sm:$0xf]
        %v1493 = vld [vmem:[%s465 + $0x1c] sm:$0xf]
        %v1494 = vld [vmem:[%s465 + $0x20] sm:$0xf]
        %v1495 = vld [vmem:[%s465 + $0x24] sm:$0xf]
        %v1496 = vld [vmem:[%s465 + $0x28] sm:$0xf]
        %v1497 = vld [vmem:[%s465 + $0x2c] sm:$0xf]
        %v1498 = vld [vmem:[%s465 + $0x30] sm:$0xf]
        %v1499 = vld [vmem:[%s465 + $0x34] sm:$0xf]
        %v1500 = vld [vmem:[%s465 + $0x38] sm:$0xf]
        %v1501 = vld [vmem:[%s465 + $0x3c] sm:$0xf]
        %v1502 = vld [vmem:[%s465 + $0x40] sm:$0xf]
        %v1503 = vld [vmem:[%s465 + $0x44] sm:$0xf]
        %v1504 = vld [vmem:[%s465 + $0x48] sm:$0xf]
        %v1505 = vld [vmem:[%s465 + $0x4c] sm:$0xf]
        %v1506 = vld [vmem:[%s465 + $0x50] sm:$0xf]
        %v1507 = vld [vmem:[%s465 + $0x54] sm:$0xf]
        %v1508 = vld [vmem:[%s465 + $0x58] sm:$0xf]
        %v1509 = vld [vmem:[%s465 + $0x5c] sm:$0xf]
        %v1510 = vld [vmem:[%s465 + $0x60] sm:$0xf]
        %v1511 = vld [vmem:[%s465 + $0x64] sm:$0xf]
        %v1512 = vld [vmem:[%s465 + $0x68] sm:$0xf]
        %v1513 = vld [vmem:[%s465 + $0x6c] sm:$0xf]
        %v1514 = vld [vmem:[%s465 + $0x70] sm:$0xf]
        %v1515 = vld [vmem:[%s465 + $0x74] sm:$0xf]
        %v1516 = vld [vmem:[%s465 + $0x78] sm:$0xf]
        %v1517 = vld [vmem:[%s465 + $0x7c] sm:$0xf]
        %v1518 = vld [vmem:[%s465 + $0x80] sm:$0xf]
        %v1519 = vld [vmem:[%s465 + $0x84] sm:$0xf]
        %v1520 = vld [vmem:[%s465 + $0x88] sm:$0xf]
        %v1521 = vld [vmem:[%s465 + $0x8c] sm:$0xf]
        %v1522 = vld [vmem:[%s465 + $0x90] sm:$0xf]
        %v1523 = vld [vmem:[%s465 + $0x94] sm:$0xf]
        %v1524 = vld [vmem:[%s465 + $0x98] sm:$0xf]
        %v1525 = vld [vmem:[%s465 + $0x9c] sm:$0xf]
        %v1526 = vld [vmem:[%s465 + $0xa0] sm:$0xf]
        %v1527 = vld [vmem:[%s465 + $0xa4] sm:$0xf]
        %v1528 = vld [vmem:[%s465 + $0xa8] sm:$0xf]
        %v1529 = vld [vmem:[%s465 + $0xac] sm:$0xf]
        %v1530 = vld [vmem:[%s465 + $0xb0] sm:$0xf]
        %v1531 = vld [vmem:[%s465 + $0xb4] sm:$0xf]
        %v1532 = vld [vmem:[%s465 + $0xb8] sm:$0xf]
        %v1533 = vld [vmem:[%s465 + $0xbc] sm:$0xf]
        %v1534 = vld [vmem:[%s465 + $0xc0] sm:$0xf]
        %v1535 = vld [vmem:[%s465 + $0xc4] sm:$0xf]
        %v1536 = vld [vmem:[%s465 + $0xc8] sm:$0xf]
        %v1537 = vld [vmem:[%s465 + $0xcc] sm:$0xf]
        %v1538 = vld [vmem:[%s465 + $0xd0] sm:$0xf]
        %v1539 = vld [vmem:[%s465 + $0xd4] sm:$0xf]
        %v1540 = vld [vmem:[%s465 + $0xd8] sm:$0xf]
        %v1541 = vld [vmem:[%s465 + $0xdc] sm:$0xf]
        %v1542 = vld [vmem:[%s465 + $0xe0] sm:$0xf]
        %v1543 = vld [vmem:[%s465 + $0xe4] sm:$0xf]
        %v1544 = vld [vmem:[%s465 + $0xe8] sm:$0xf]
        %v1545 = vld [vmem:[%s465 + $0xec] sm:$0xf]
        %v1546 = vld [vmem:[%s465 + $0xf0] sm:$0xf]
        %v1547 = vld [vmem:[%s465 + $0xf4] sm:$0xf]
        %v1548 = vld [vmem:[%s465 + $0xf8] sm:$0xf]
        %v1549 = vld [vmem:[%s465 + $0xfc] sm:$0xf]
        %v1550 = vperm.slane %v601, 2
        %v1615 = vunpack.c.l.b16 %v1486
        %v1616 = vunpack.c.l.b16 %v1487
        %v1617 = vunpack.c.l.b16 %v1488
        %v1618 = vunpack.c.l.b16 %v1489
        %v1619 = vunpack.c.l.b16 %v1490
        %v1620 = vunpack.c.l.b16 %v1491
        %v1621 = vunpack.c.l.b16 %v1492
        %v1622 = vunpack.c.l.b16 %v1493
        %v1623 = vunpack.c.l.b16 %v1494
        %v1624 = vunpack.c.l.b16 %v1495
        %v1625 = vunpack.c.l.b16 %v1496
        %v1626 = vunpack.c.l.b16 %v1497
        %v1627 = vunpack.c.l.b16 %v1498
        %v1628 = vunpack.c.l.b16 %v1499
        %v1629 = vunpack.c.l.b16 %v1500
        %v1630 = vunpack.c.l.b16 %v1501
        %v1631 = vunpack.c.l.b16 %v1502
        %v1632 = vunpack.c.l.b16 %v1503
        %v1633 = vunpack.c.l.b16 %v1504
        %v1634 = vunpack.c.l.b16 %v1505
        %v1635 = vunpack.c.l.b16 %v1506
        %v1636 = vunpack.c.l.b16 %v1507
        %v1637 = vunpack.c.l.b16 %v1508
        %v1638 = vunpack.c.l.b16 %v1509
        %v1639 = vunpack.c.l.b16 %v1510
        %v1640 = vunpack.c.l.b16 %v1511
        %v1641 = vunpack.c.l.b16 %v1512
        %v1642 = vunpack.c.l.b16 %v1513
        %v1643 = vunpack.c.l.b16 %v1514
        %v1644 = vunpack.c.l.b16 %v1515
        %v1645 = vunpack.c.l.b16 %v1516
        %v1646 = vunpack.c.l.b16 %v1517
        %v1647 = vunpack.c.l.b16 %v1518
        %v1648 = vunpack.c.l.b16 %v1519
        %v1649 = vunpack.c.l.b16 %v1520
        %v1650 = vunpack.c.l.b16 %v1521
        %v1651 = vunpack.c.l.b16 %v1522
        %v1652 = vunpack.c.l.b16 %v1523
        %v1653 = vunpack.c.l.b16 %v1524
        %v1654 = vunpack.c.l.b16 %v1525
        %v1655 = vunpack.c.l.b16 %v1526
        %v1656 = vunpack.c.l.b16 %v1527
        %v1657 = vunpack.c.l.b16 %v1528
        %v1658 = vunpack.c.l.b16 %v1529
        %v1659 = vunpack.c.l.b16 %v1530
        %v1660 = vunpack.c.l.b16 %v1531
        %v1661 = vunpack.c.l.b16 %v1532
        %v1662 = vunpack.c.l.b16 %v1533
        %v1663 = vunpack.c.l.b16 %v1534
        %v1664 = vunpack.c.l.b16 %v1535
        %v1665 = vunpack.c.l.b16 %v1536
        %v1666 = vunpack.c.l.b16 %v1537
        %v1667 = vunpack.c.l.b16 %v1538
        %v1668 = vunpack.c.l.b16 %v1539
        %v1669 = vunpack.c.l.b16 %v1540
        %v1670 = vunpack.c.l.b16 %v1541
        %v1671 = vunpack.c.l.b16 %v1542
        %v1672 = vunpack.c.l.b16 %v1543
        %v1673 = vunpack.c.l.b16 %v1544
        %v1674 = vunpack.c.l.b16 %v1545
        %v1675 = vunpack.c.l.b16 %v1546
        %v1676 = vunpack.c.l.b16 %v1547
        %v1677 = vunpack.c.l.b16 %v1548
        %v1678 = vunpack.c.l.b16 %v1549
        %v1679 = vpack.c.b16 %v1616, %v1615
        %v1680 = vpack.c.b16 %v1618, %v1617
        %v1681 = vpack.c.b16 %v1620, %v1619
        %v1682 = vpack.c.b16 %v1622, %v1621
        %v1683 = vpack.c.b16 %v1624, %v1623
        %v1684 = vpack.c.b16 %v1626, %v1625
        %v1685 = vpack.c.b16 %v1628, %v1627
        %v1686 = vpack.c.b16 %v1630, %v1629
        %v1687 = vpack.c.b16 %v1632, %v1631
        %v1688 = vpack.c.b16 %v1634, %v1633
        %v1689 = vpack.c.b16 %v1636, %v1635
        %v1690 = vpack.c.b16 %v1638, %v1637
        %v1691 = vpack.c.b16 %v1640, %v1639
        %v1692 = vpack.c.b16 %v1642, %v1641
        %v1693 = vpack.c.b16 %v1644, %v1643
        %v1694 = vpack.c.b16 %v1646, %v1645
        %v1695 = vpack.c.b16 %v1648, %v1647
        %v1696 = vpack.c.b16 %v1650, %v1649
        %v1697 = vpack.c.b16 %v1652, %v1651
        %v1698 = vpack.c.b16 %v1654, %v1653
        %v1699 = vpack.c.b16 %v1656, %v1655
        %v1700 = vpack.c.b16 %v1658, %v1657
        %v1701 = vpack.c.b16 %v1660, %v1659
        %v1702 = vpack.c.b16 %v1662, %v1661
        %v1703 = vpack.c.b16 %v1664, %v1663
        %v1704 = vpack.c.b16 %v1666, %v1665
        %v1705 = vpack.c.b16 %v1668, %v1667
        %v1706 = vpack.c.b16 %v1670, %v1669
        %v1707 = vpack.c.b16 %v1672, %v1671
        %v1708 = vpack.c.b16 %v1674, %v1673
        %v1709 = vpack.c.b16 %v1676, %v1675
        %v1710 = vpack.c.b16 %v1678, %v1677
        %1743 = vmatpush.bf16.msra.mxu0 %v1686
        %1744 = vmatpush.bf16.msra.mxu0 %v1685
        %1745 = vmatpush.bf16.msra.mxu0 %v1684
        %1746 = vmatpush.bf16.msra.mxu0 %v1683
        %1747 = vmatpush.bf16.msra.mxu0 %v1682
        %1748 = vmatpush.bf16.msra.mxu0 %v1681
        %1749 = vmatpush.bf16.msra.mxu0 %v1680
        %1750 = vmatpush.bf16.msra.mxu0 %v1679
        %1751 = vmatmul.bf16.gmra.mxu0 %v1482
        %v1752 = vpop.f32.mrf.mxu0
        %v1753 = vadd.f32 %v1550, %v1752
        %v1754 = vpop.f32.mrf.mxu0
        %v1755 = vadd.f32 %v1550, %v1754
        %1756 = vdwg.mxu0
        %1757 = vmatpush.bf16.msra.mxu0 %v1694
        %1758 = vmatpush.bf16.msra.mxu0 %v1693
        %1759 = vmatpush.bf16.msra.mxu0 %v1692
        %1760 = vmatpush.bf16.msra.mxu0 %v1691
        %1761 = vmatpush.bf16.msra.mxu0 %v1690
        %1762 = vmatpush.bf16.msra.mxu0 %v1689
        %1763 = vmatpush.bf16.msra.mxu0 %v1688
        %1764 = vmatpush.bf16.msra.mxu0 %v1687
        %1765 = vmatmul.bf16.gmra.mxu0 %v1483
        %v1766 = vpop.f32.mrf.mxu0
        %v1767 = vadd.f32 %v1753, %v1766
        %v1768 = vpop.f32.mrf.mxu0
        %v1769 = vadd.f32 %v1755, %v1768
        %1770 = vdwg.mxu0
        %1771 = vmatpush.bf16.msra.mxu0 %v1702
        %1772 = vmatpush.bf16.msra.mxu0 %v1701
        %1773 = vmatpush.bf16.msra.mxu0 %v1700
        %1774 = vmatpush.bf16.msra.mxu0 %v1699
        %1775 = vmatpush.bf16.msra.mxu0 %v1698
        %1776 = vmatpush.bf16.msra.mxu0 %v1697
        %1777 = vmatpush.bf16.msra.mxu0 %v1696
        %1778 = vmatpush.bf16.msra.mxu0 %v1695
        %1779 = vmatmul.bf16.gmra.mxu0 %v1484
        %v1780 = vpop.f32.mrf.mxu0
        %v1781 = vadd.f32 %v1767, %v1780
        %v1782 = vpop.f32.mrf.mxu0
        %v1783 = vadd.f32 %v1769, %v1782
        %1784 = vdwg.mxu0
        %1785 = vmatpush.bf16.msra.mxu0 %v1710
        %1786 = vmatpush.bf16.msra.mxu0 %v1709
        %1787 = vmatpush.bf16.msra.mxu0 %v1708
        %1788 = vmatpush.bf16.msra.mxu0 %v1707
        %1789 = vmatpush.bf16.msra.mxu0 %v1706
        %1790 = vmatpush.bf16.msra.mxu0 %v1705
        %1791 = vmatpush.bf16.msra.mxu0 %v1704
        %1792 = vmatpush.bf16.msra.mxu0 %v1703
        %1793 = vmatmul.bf16.gmra.mxu0 %v1485
        %v1794 = vpop.f32.mrf.mxu0
        %v1795 = vadd.f32 %v1781, %v1794
        %v1796 = vpop.f32.mrf.mxu0
        %v1797 = vadd.f32 %v1783, %v1796
        %1798 = vdwg.mxu0
        %v1799 = vadd.f32 %v1795, %v1155
        %v1800 = vadd.f32 %v1797, %v1156
        %1801 = vadd.xlane.f32.xlu0 %v1799
        %v1802 = vpop.xlane.xlu0 %1801
        %1803 = vadd.xlane.f32.xlu0 %v1800
        %v1804 = vpop.xlane.xlu0 %1803
        %v1805 = vmul.f32 %v1802, %v1114
        %v1806 = vmul.f32 %v1804, %v1114
        %v1807 = vsub.f32 %v1799, %v1805
        %v1808 = vsub.f32 %v1800, %v1806
        %v1809 = vmul.f32 %v1807, %v1807
        %v1810 = vmul.f32 %v1808, %v1808
        %1811 = vadd.xlane.f32.xlu0 %v1809
        %v1812 = vpop.xlane.xlu0 %1811
        %1813 = vadd.xlane.f32.xlu0 %v1810
        %v1814 = vpop.xlane.xlu0 %1813
        %v1815 = vmul.f32 %v1812, %v1114
        %v1816 = vmul.f32 %v1814, %v1114
        %v1817 = vadd.f32 %v1815, 1e-12
        %v1818 = vadd.f32 %v1816, 1e-12
        %v1819 = vrsqrt.pop %v1817
        %v1820 = vmul.f32 %v1819, %v1817
        %v1821 = vmul.f32 %v1820, %v1819
        %v1822 = vmul.f32 0.5, %v1821
        %v1823 = vsub.f32 1.5, %v1822
        %v1824 = vmul.f32 %v1819, %v1823
        %vm1825 = vweird.f32 %v1817
        %vm1826 = vweird.f32 %v1819
        %vm1827 = vmor %vm1825, %vm1826
        %v1828 = vsel %vm1827, %v1819, %v1824
        %v1829 = vrsqrt.pop %v1818
        %v1830 = vmul.f32 %v1829, %v1818
        %v1831 = vmul.f32 %v1830, %v1829
        %v1832 = vmul.f32 0.5, %v1831
        %v1833 = vsub.f32 1.5, %v1832
        %v1834 = vmul.f32 %v1829, %v1833
        %vm1835 = vweird.f32 %v1818
        %vm1836 = vweird.f32 %v1829
        %vm1837 = vmor %vm1835, %vm1836
        %v1838 = vsel %vm1837, %v1829, %v1834
        %v1839 = vmul.f32 %v1807, %v1828
        %v1840 = vmul.f32 %v1808, %v1838
        %v1841 = vperm.slane %v600, 3
        %v1842 = vmul.f32 %v1839, %v1841
        %v1843 = vmul.f32 %v1840, %v1841
        %v1844 = vperm.slane %v601, 3
        %v1845 = vadd.f32 %v1842, %v1844
        %v1846 = vadd.f32 %v1843, %v1844
        %1847 = vst [vmem:[#allocation2] sm:$0xff] %v1845
        %1848 = vst [vmem:[#allocation2 + $0x8] sm:$0xff] %v1846
        %p1849 = scmp.eq.s32.totalorder %s34, 1
        // Predicated region
        $region81: #{roberta_forward.1} parent=59 // pred_check
          %p1850 = pneg %p1849
        $region82: #{roberta_forward.1} parent=59 // pred_check_branch
          %1852 = sbr.rel (%p1850) target = $region84
        $region83: #{roberta_forward.1} parent=59 // pred_region
          %v1853 = vrot.slane %v1845, 4
          %v1854 = vadd.f32 %v1845, %v1853
          %v1855 = vrot.slane %v1854, 2
          %v1856 = vadd.f32 %v1854, %v1855
          %v1857 = vrot.slane %v1856, 1
          %v1858 = vadd.f32 %v1856, %v1857
          %v1859 = vrot.slane %v1846, 4
          %v1860 = vadd.f32 %v1846, %v1859
          %v1861 = vrot.slane %v1860, 2
          %v1862 = vadd.f32 %v1860, %v1861
          %v1863 = vrot.slane %v1862, 1
          %v1864 = vadd.f32 %v1862, %v1863
          %v1865 = vrcp.pop 8.0
          %v1866 = vmul.f32 8.0, %v1865
          %v1867 = vsub.f32 1.0, %v1866
          %v1868 = vmul.f32 %v1865, %v1867
          %v1869 = vadd.f32 %v1865, %v1868
          %vm1870 = vweird.f32 %v1865
          %v1871 = vsel %vm1870, %v1865, %v1869
          %v1872 = vmul.f32 %v1858, %v1871
          %v1873 = vmul.f32 %v1864, %v1871
          %v1874 = vpack.c.bf16 %v1845, %v1845
          %v1875 = vpack.c.bf16 %v1846, %v1846
          %v1876 = vld [vmem:[%s3] sm:$0xf]
          %v1877 = vld [vmem:[%s3 + $0x4] sm:$0xf]
          %v1878 = vld [vmem:[%s3 + $0x8] sm:$0xf]
          %v1879 = vld [vmem:[%s3 + $0xc] sm:$0xf]
          %v1880 = vld [vmem:[%s3 + $0x10] sm:$0xf]
          %v1881 = vld [vmem:[%s3 + $0x14] sm:$0xf]
          %v1882 = vld [vmem:[%s3 + $0x18] sm:$0xf]
          %v1883 = vld [vmem:[%s3 + $0x1c] sm:$0xf]
          %v1884 = vld [vmem:[%s3 + $0x20] sm:$0xf]
          %v1885 = vld [vmem:[%s3 + $0x24] sm:$0xf]
          %v1886 = vld [vmem:[%s3 + $0x28] sm:$0xf]
          %v1887 = vld [vmem:[%s3 + $0x2c] sm:$0xf]
          %v1888 = vld [vmem:[%s3 + $0x30] sm:$0xf]
          %v1889 = vld [vmem:[%s3 + $0x34] sm:$0xf]
          %v1890 = vld [vmem:[%s3 + $0x38] sm:$0xf]
          %v1891 = vld [vmem:[%s3 + $0x3c] sm:$0xf]
          %v1892 = vld [vmem:[%s2] sm:$0x1]
          %v1893 = vperm.slane %v1892, 0
          %v1896 = vunpack.c.l.b16 %v1874
          %v1897 = vunpack.c.l.b16 %v1875
          %v1898 = vrot.slane %v1897, 7
          %vm1899 = vcmask 1041409
          %v1900 = vsel %vm1899, %v1898, %v1896
          %v1901 = vpack.c.b16 %v1900, %v1900
          %v1919 = vunpack.c.l.b16 %v1876
          %v1920 = vunpack.c.l.b16 %v1877
          %v1921 = vunpack.c.l.b16 %v1878
          %v1922 = vunpack.c.l.b16 %v1879
          %v1923 = vunpack.c.l.b16 %v1880
          %v1924 = vunpack.c.l.b16 %v1881
          %v1925 = vunpack.c.l.b16 %v1882
          %v1926 = vunpack.c.l.b16 %v1883
          %v1927 = vunpack.c.l.b16 %v1884
          %v1928 = vunpack.c.l.b16 %v1885
          %v1929 = vunpack.c.l.b16 %v1886
          %v1930 = vunpack.c.l.b16 %v1887
          %v1931 = vunpack.c.l.b16 %v1888
          %v1932 = vunpack.c.l.b16 %v1889
          %v1933 = vunpack.c.l.b16 %v1890
          %v1934 = vunpack.c.l.b16 %v1891
          %v1935 = vpack.c.b16 %v1920, %v1919
          %v1936 = vpack.c.b16 %v1922, %v1921
          %v1937 = vpack.c.b16 %v1924, %v1923
          %v1938 = vpack.c.b16 %v1926, %v1925
          %v1939 = vpack.c.b16 %v1928, %v1927
          %v1940 = vpack.c.b16 %v1930, %v1929
          %v1941 = vpack.c.b16 %v1932, %v1931
          %v1942 = vpack.c.b16 %v1934, %v1933
          %1951 = vmatpush.bf16.msra.mxu0 %v1942
          %1952 = vmatpush.bf16.msra.mxu0 %v1941
          %1953 = vmatpush.bf16.msra.mxu0 %v1940
          %1954 = vmatpush.bf16.msra.mxu0 %v1939
          %1955 = vmatpush.bf16.msra.mxu0 %v1938
          %1956 = vmatpush.bf16.msra.mxu0 %v1937
          %1957 = vmatpush.bf16.msra.mxu0 %v1936
          %1958 = vmatpush.bf16.msra.mxu0 %v1935
          %1959 = vmatmul.bf16.gmra.mxu0 %v1901
          %v1960 = vpop.f32.mrf.mxu0
          %v1961 = vadd.f32 %v1893, %v1960
          %v1962 = vpop.f32.mrf.mxu0
          %1963 = vdwg.mxu0
          %v1964 = vtanh.pop %v1961
          %v1967 = vsel %vm1899, %v1873, %v1872
          %v1970 = vrot.slane %v1967, 6
          %vm1971 = vcmask 1041408
          %v1972 = vsel %vm1971, %v1964, %v1970
          %1974 = vst [vmem:[#allocation12] sm:$0xf] %v1972
          %v1975 = vpack.c.bf16 %v1964, %v1964
          %v1976 = vpack.c.bf16 %v1967, %v1967
          %v1977 = vld [vmem:[%s4] sm:$0xf]
          %v1978 = vld [vmem:[%s4 + $0x4] sm:$0xf]
          %v1979 = vld [vmem:[%s4 + $0x8] sm:$0xf]
          %v1980 = vld [vmem:[%s4 + $0xc] sm:$0xf]
          %v1981 = vld [vmem:[%s4 + $0x10] sm:$0xf]
          %v1982 = vld [vmem:[%s4 + $0x14] sm:$0xf]
          %v1983 = vld [vmem:[%s4 + $0x18] sm:$0xf]
          %v1984 = vld [vmem:[%s4 + $0x1c] sm:$0xf]
          %v1985 = vld [vmem:[%s4 + $0x20] sm:$0xf]
          %v1986 = vld [vmem:[%s4 + $0x24] sm:$0xf]
          %v1987 = vld [vmem:[%s4 + $0x28] sm:$0xf]
          %v1988 = vld [vmem:[%s4 + $0x2c] sm:$0xf]
          %v1989 = vld [vmem:[%s4 + $0x30] sm:$0xf]
          %v1990 = vld [vmem:[%s4 + $0x34] sm:$0xf]
          %v1991 = vld [vmem:[%s4 + $0x38] sm:$0xf]
          %v1992 = vld [vmem:[%s4 + $0x3c] sm:$0xf]
          %v1993 = vld [vmem:[%s4 + $0x40] sm:$0xf]
          %v1994 = vld [vmem:[%s4 + $0x44] sm:$0xf]
          %v1995 = vld [vmem:[%s4 + $0x48] sm:$0xf]
          %v1996 = vld [vmem:[%s4 + $0x4c] sm:$0xf]
          %v1997 = vld [vmem:[%s4 + $0x50] sm:$0xf]
          %v1998 = vld [vmem:[%s4 + $0x54] sm:$0xf]
          %v1999 = vld [vmem:[%s4 + $0x58] sm:$0xf]
          %v2000 = vld [vmem:[%s4 + $0x5c] sm:$0xf]
          %v2001 = vld [vmem:[%s4 + $0x60] sm:$0xf]
          %v2002 = vld [vmem:[%s4 + $0x64] sm:$0xf]
          %v2003 = vld [vmem:[%s4 + $0x68] sm:$0xf]
          %v2004 = vld [vmem:[%s4 + $0x6c] sm:$0xf]
          %v2005 = vld [vmem:[%s4 + $0x70] sm:$0xf]
          %v2006 = vld [vmem:[%s4 + $0x74] sm:$0xf]
          %v2007 = vld [vmem:[%s4 + $0x78] sm:$0xf]
          %v2008 = vld [vmem:[%s4 + $0x7c] sm:$0xf]
          %v2009 = vld [vmem:[%s2 + $0x1] sm:$0x1]
          %v2010 = vperm.slane %v2009, 0
          %v2043 = vunpack.c.l.b16 %v1977
          %v2044 = vunpack.c.l.b16 %v1978
          %v2045 = vunpack.c.l.b16 %v1979
          %v2046 = vunpack.c.l.b16 %v1980
          %v2047 = vunpack.c.l.b16 %v1981
          %v2048 = vunpack.c.l.b16 %v1982
          %v2049 = vunpack.c.l.b16 %v1983
          %v2050 = vunpack.c.l.b16 %v1984
          %v2051 = vunpack.c.l.b16 %v1985
          %v2052 = vunpack.c.l.b16 %v1986
          %v2053 = vunpack.c.l.b16 %v1987
          %v2054 = vunpack.c.l.b16 %v1988
          %v2055 = vunpack.c.l.b16 %v1989
          %v2056 = vunpack.c.l.b16 %v1990
          %v2057 = vunpack.c.l.b16 %v1991
          %v2058 = vunpack.c.l.b16 %v1992
          %v2059 = vunpack.c.l.b16 %v1993
          %v2060 = vunpack.c.l.b16 %v1994
          %v2061 = vunpack.c.l.b16 %v1995
          %v2062 = vunpack.c.l.b16 %v1996
          %v2063 = vunpack.c.l.b16 %v1997
          %v2064 = vunpack.c.l.b16 %v1998
          %v2065 = vunpack.c.l.b16 %v1999
          %v2066 = vunpack.c.l.b16 %v2000
          %v2067 = vunpack.c.l.b16 %v2001
          %v2068 = vunpack.c.l.b16 %v2002
          %v2069 = vunpack.c.l.b16 %v2003
          %v2070 = vunpack.c.l.b16 %v2004
          %v2071 = vunpack.c.l.b16 %v2005
          %v2072 = vunpack.c.l.b16 %v2006
          %v2073 = vunpack.c.l.b16 %v2007
          %v2074 = vunpack.c.l.b16 %v2008
          %v2075 = vpack.c.b16 %v2044, %v2043
          %v2076 = vpack.c.b16 %v2046, %v2045
          %v2077 = vpack.c.b16 %v2048, %v2047
          %v2078 = vpack.c.b16 %v2050, %v2049
          %v2079 = vpack.c.b16 %v2052, %v2051
          %v2080 = vpack.c.b16 %v2054, %v2053
          %v2081 = vpack.c.b16 %v2056, %v2055
          %v2082 = vpack.c.b16 %v2058, %v2057
          %v2083 = vpack.c.b16 %v2060, %v2059
          %v2084 = vpack.c.b16 %v2062, %v2061
          %v2085 = vpack.c.b16 %v2064, %v2063
          %v2086 = vpack.c.b16 %v2066, %v2065
          %v2087 = vpack.c.b16 %v2068, %v2067
          %v2088 = vpack.c.b16 %v2070, %v2069
          %v2089 = vpack.c.b16 %v2072, %v2071
          %v2090 = vpack.c.b16 %v2074, %v2073
          %2107 = vmatpush.bf16.msra.mxu0 %v2082
          %2108 = vmatpush.bf16.msra.mxu0 %v2081
          %2109 = vmatpush.bf16.msra.mxu0 %v2080
          %2110 = vmatpush.bf16.msra.mxu0 %v2079
          %2111 = vmatpush.bf16.msra.mxu0 %v2078
          %2112 = vmatpush.bf16.msra.mxu0 %v2077
          %2113 = vmatpush.bf16.msra.mxu0 %v2076
          %2114 = vmatpush.bf16.msra.mxu0 %v2075
          %2115 = vmatmul.bf16.gmra.mxu0 %v1975
          %v2116 = vpop.f32.mrf.mxu0
          %v2117 = vadd.f32 %v2010, %v2116
          %v2118 = vpop.f32.mrf.mxu0
          %2119 = vdwg.mxu0
          %2120 = vmatpush.bf16.msra.mxu0 %v2090
          %2121 = vmatpush.bf16.msra.mxu0 %v2089
          %2122 = vmatpush.bf16.msra.mxu0 %v2088
          %2123 = vmatpush.bf16.msra.mxu0 %v2087
          %2124 = vmatpush.bf16.msra.mxu0 %v2086
          %2125 = vmatpush.bf16.msra.mxu0 %v2085
          %2126 = vmatpush.bf16.msra.mxu0 %v2084
          %2127 = vmatpush.bf16.msra.mxu0 %v2083
          %2128 = vmatmul.bf16.gmra.mxu0 %v1976
          %v2129 = vpop.f32.mrf.mxu0
          %v2130 = vadd.f32 %v2117, %v2129
          %v2131 = vpop.f32.mrf.mxu0
          %2132 = vdwg.mxu0
          %2133 = vst [vmem:[#allocation11] sm:$0x3] %v2130
        $region84: #{roberta_forward.1} parent=59 // pred_fallthru
          _
        // Predicated region
        $region85: #{roberta_forward.1} parent=59 // pred_check
          %p2134 = pneg %p282
        $region86: #{roberta_forward.1} parent=59 // pred_check_branch
          %2136 = sbr.rel (%p2134) target = $region88
        $region87: #{roberta_forward.1} parent=59 // pred_region
          %2138 = vsyncadd [#allocation5], 0
          %s2140 = sshll.u32 [#allocation11], 4
          %s2141 = int_to_ptr.vmem [resolvable:$true] %s2140
          %s2142 = sshll.u32 %s10, 4
          %s2143 = int_to_ptr.hbm [resolvable:$true] %s2142
          %2145 = dma.vmem_to_hbm [thread:$0]  %s2141, 32, %s2143, [#allocation5]
        $region88: #{roberta_forward.1} parent=59 // pred_fallthru
          _
        // Predicated region
        $region89: #{roberta_forward.1} parent=59 // pred_check
          %p2146 = pneg %p303
        $region90: #{roberta_forward.1} parent=59 // pred_check_branch
          %2148 = sbr.rel (%p2146) target = $region92
        $region91: #{roberta_forward.1} parent=59 // pred_region
          %2150 = vsyncadd [#allocation13], 0
          %s2152 = sshll.u32 [#allocation12], 4
          %s2153 = int_to_ptr.vmem [resolvable:$true] %s2152
          %s2154 = sshll.u32 %s11, 4
          %s2155 = int_to_ptr.hbm [resolvable:$true] %s2154
          %2157 = dma.vmem_to_hbm [thread:$0]  %s2153, 64, %s2155, [#allocation13]
        $region92: #{roberta_forward.1} parent=59 // pred_fallthru
          _
        // Predicated region
        $region93: #{roberta_forward.1} parent=59 // pred_check
          %p2158 = pneg %p282
        $region94: #{roberta_forward.1} parent=59 // pred_check_branch
          %2160 = sbr.rel (%p2158) target = $region96
        $region95: #{roberta_forward.1} parent=59 // pred_region
          %2162 = dma.done [#allocation5], 32
        $region96: #{roberta_forward.1} parent=59 // pred_fallthru
          _
        // Predicated region
        $region97: #{roberta_forward.1} parent=59 // pred_check
          %p2163 = pneg %p303
        $region98: #{roberta_forward.1} parent=59 // pred_check_branch
          %2165 = sbr.rel (%p2163) target = $region100
        $region99: #{roberta_forward.1} parent=59 // pred_region
          %2167 = dma.done [#allocation13], 64
        $region100: #{roberta_forward.1} parent=59 // pred_fallthru
          _
      $region60: #{roberta_forward.1} parent=5 // pred_fallthru
        _
      %p2168 = scmp.le.s32.totalorder 2, %s29
      // Predicated region
      $region101: #{roberta_forward.1} parent=5 // pred_check
        %p2169 = pneg %p2168
      $region102: #{roberta_forward.1} parent=5 // pred_check_branch
        %2171 = sbr.rel (%p2169) target = $region104
      $region103: #{roberta_forward.1} parent=5 // pred_region
        %s2172 = ssub.s32 %s29, 2
      $region104: #{roberta_forward.1} parent=5 // pred_fallthru
        _
    $region6: #{roberta_forward.1} parent=1 // loop_footer
      %s33 = sadd.s32 1, %s29
    $region7: #{roberta_forward.1} parent=1 // loop_footer_branch
      %28 = sbr.rel target = $region3
    $region8: #{roberta_forward.1} parent=1 // loop_exit
      _
    %2173 = vsyncpa [#allocation4], 1
    %s2174 = scalar_lea.sflag [#allocation4], 1
    %2175 = vsyncpa %s2174, 1
    %2176 = vsyncpa [#allocation7], 1
    %s2177 = scalar_lea.sflag [#allocation7], 1
    %2178 = vsyncpa %s2177, 1
    %2179 = vsyncpa [#allocation10], 1
    %s2180 = scalar_lea.sflag [#allocation10], 1
    %2181 = vsyncpa %s2180, 1
    %2182 = vsyncpa [#allocation5], 1
    %s2183 = scalar_lea.sflag [#allocation5], 1
    %2184 = vsyncpa %s2183, 1
    %2185 = vsyncpa [#allocation13], 1

</llo_original>
